<compile_context>
chip_gen: v5e
topology: v5e:2x2
jax: 0.10.0
libtpu: 0.0.40
codegen_flags: <defaults>
</compile_context>

<pallas_src>
import math
import numpy as np
import jax
import jax.numpy as jnp
from jax import lax
from jax.experimental import pallas as pl
from jax.experimental.pallas import tpu as pltpu


# ----------------------------------------------------------------------------
# Main Pallas kernel: spatial stage + depthwise temporal convs + per-sample
# Gram matrices for a block of B_blk samples per grid step.
# ----------------------------------------------------------------------------
def _make_csnet_kernel(n_filters, n_chans, C, T, Kmax, pmax, F, B_blk,
                       use_bf16_mxu):
    inv_t = 1.0 / float(T - 1)
    mxu_dtype = jnp.bfloat16 if use_bf16_mxu else jnp.float32

    def kernel(x_ref, m_ref, c_ref, w_ref, out_ref):
        # 1) spatial convs + merge conv + BatchNorm folded into one affine map,
        #    applied as a batched MXU matmul (bf16 operands, f32 accumulation).
        xq = x_ref[...].astype(mxu_dtype)                        # (B, n_chans, T)
        m_b = jnp.broadcast_to(m_ref[...].astype(mxu_dtype),
                               (B_blk, C, n_chans))
        xs = lax.dot_general(m_b, xq, (((2,), (1,)), ((0,), (0,))),
                             preferred_element_type=jnp.float32)  # (B, C, T)
        xs = xs + c_ref[...]                                      # (C, 1) bias

        # per-sample time index for 'same'-padding masks (one lane iota, no %)
        t_idx = lax.broadcasted_iota(jnp.int32, (1, 1, T), 2)

        # 2) depthwise temporal convs ("same" padding).  Tap loop outermost so
        #    each shifted view is built once (pltpu.roll on the idle XLU slot +
        #    boundary mask) and reused by every filter.  BN scale is folded into
        #    the tap weights; w_ref[..., Kmax] is the per-channel shift.
        w = w_ref[...]                                            # (nF, C, Kmax+1)
        accs = [jnp.zeros((B_blk, C, T), jnp.float32) for _ in range(n_filters)]
        for k in range(Kmax):
            d = k - pmax                                          # tap offset in time
            if d == 0:
                tap = xs
            else:
                rolled = pltpu.roll(xs, shift=(-d) % T, axis=2)
                valid = (t_idx < (T - d)) if d > 0 else (t_idx >= (-d))
                tap = jnp.where(valid, rolled, 0.0)
            for f in range(n_filters):
                accs[f] = accs[f] + w[f, :, k:k + 1] * tap        # (C,1) broadcast

        # 3) Xt = stacked filter outputs (filter-major, channel-minor)
        xt = jnp.concatenate(
            [accs[f] + w[f, :, Kmax:Kmax + 1] for f in range(n_filters)],
            axis=1)                                               # (B, F, T)

        # 4) batched per-sample Gram (no stacked (B*F)^2 waste), packed once
        #    into a single lane-dense (F, B_blk*F) store.
        xt_q = xt.astype(mxu_dtype)
        gram = lax.dot_general(xt_q, xt_q, (((2,), (2,)), ((0,), (0,))),
                               preferred_element_type=jnp.float32) * inv_t
        out_ref[0] = jnp.concatenate([gram[b] for b in range(B_blk)], axis=1)

    return kernel


def csnet_gram(x, M_rep, c_rep, Wb, *, n_filters, Kmax, use_bf16_mxu=True,
               B_blk=None):
    """x: (B, n_chans, T) -> per-sample Gram matrices (B, F, F)."""
    B, n_chans, T = x.shape
    C = M_rep.shape[0]
    F = n_filters * C
    pmax = Kmax // 2

    if B_blk is None:
        # smallest block giving a lane-dense (multiple-of-128) output slab
        lane_mult = 128 // math.gcd(F, 128)
        B_blk = lane_mult
        # conv-stage working set per sample (accumulators + xs + tap/rolled)
        ws = (n_filters + 3) * C * T * 4
        budget = 40 * 4 * 1024          # ~40 of 64 vregs before heavy spilling
        # grow in powers of two (stays a multiple of lane_mult) while it fits
        # the vreg budget and still leaves >= 2 grid steps for pipelining /
        # v7x's second TensorCore.
        while (2 * B_blk * ws <= budget) and (B >= 4 * B_blk):
            B_blk *= 2

    B_pad = ((B + B_blk - 1) // B_blk) * B_blk
    if B_pad != B:
        # padded zero samples are cheap and discarded host-side after the call
        x = jnp.concatenate(
            [x, jnp.zeros((B_pad - B, n_chans, T), x.dtype)], axis=0)
    G = B_pad // B_blk

    kernel = _make_csnet_kernel(n_filters, n_chans, C, T, Kmax, pmax, F, B_blk,
                                use_bf16_mxu)

    cp = dict(dimension_semantics=("parallel",))
    # rough per-step VMEM estimate (double-buffered IO + live intermediates)
    est = 4 * (2 * (B_blk * n_chans * T + C * (n_chans + 1)
                    + n_filters * C * (Kmax + 1) + F * B_blk * F)
               + B_blk * C * T * (n_filters + 3) + B_blk * F * T
               + 2 * B_blk * F * F)
    if est > 24 * (1 << 20):
        try:                            # cap at ~85% of this chip's VMEM
            vmem_cap = int(pltpu.get_tpu_info().vmem_capacity_bytes)
        except Exception:
            vmem_cap = 64 * (1 << 20)   # v7x has the smallest VMEM (64 MiB)
        cp["vmem_limit_bytes"] = int(min(est * 5 // 4, vmem_cap * 85 // 100))
        # TODO(synk): for very large T on v7x, add an inner T-chunk loop that
        # accumulates the Gram into VMEM scratch (halo = pmax taps) instead of
        # raising the scoped limit further.

    out = pl.pallas_call(
        kernel,
        out_shape=jax.ShapeDtypeStruct((G, F, B_blk * F), jnp.float32),
        grid_spec=pltpu.PrefetchScalarGridSpec(
            num_scalar_prefetch=0,
            grid=(G,),
            in_specs=[
                pl.BlockSpec((B_blk, n_chans, T), lambda i: (i, 0, 0)),
                pl.BlockSpec((C, n_chans), lambda i: (0, 0)),
                pl.BlockSpec((C, 1), lambda i: (0, 0)),
                pl.BlockSpec((n_filters, C, Kmax + 1), lambda i: (0, 0, 0)),
            ],
            out_specs=pl.BlockSpec((1, F, B_blk * F), lambda i: (i, 0, 0)),
        ),
        compiler_params=pltpu.CompilerParams(**cp),
    )(x, M_rep, c_rep, Wb)

    # unpack the lane-dense (G, F, B_blk*F) slab back to (B, F, F) host-side
    gram = (out.reshape(G, F, B_blk, F)
               .transpose(0, 2, 1, 3)
               .reshape(B_pad, F, F))[:B]
    return gram


# ----------------------------------------------------------------------------
# Deterministic parameter construction (mirrors CSNet.__init__ shapes)
# ----------------------------------------------------------------------------
def build_params(key, n_chans, n_class, spatial_expansion, spatial_merge,
                 filters, temporal_expansion):
    rngs = iter(jax.random.split(key, 64))

    def rnd(shape, scale=1.0):
        return np.asarray(jax.random.normal(next(rngs), shape, jnp.float32)) * scale

    base_size = 2 if n_chans <= 64 else 3 if n_chans <= 128 else 4
    feature_dim = [(spatial_expansion // (n_chans - base_size ** i + 1), base_size ** i)
                   for i in range(2, 6) if base_size ** i < n_chans]
    feature_dim.append((spatial_expansion, n_chans))

    # spatial convs[:-1] : Conv2d(1, d0, kernel=(d1, 1)) -> linear map over chans
    rows_total = sum(d0 * (n_chans - d1 + 1) for d0, d1 in feature_dim)
    A1 = np.zeros((rows_total, n_chans), np.float32)
    b1 = np.zeros((rows_total,), np.float32)
    r = 0
    for d0, d1 in feature_dim:
        Hout = n_chans - d1 + 1
        W = rnd((d0, d1), 1.0 / np.sqrt(d1))
        bi = rnd((d0,), 0.1)
        for c in range(d0):
            for h in range(Hout):
                A1[r, h:h + d1] = W[c]
                b1[r] = bi[c]
                r += 1

    # merge conv: Conv2d(1, SM, kernel=(rows_total, 1)) + BatchNorm2d(SM) (eval)
    SM = spatial_merge
    eps_bn = 1e-5
    W2 = rnd((SM, rows_total), 1.0 / np.sqrt(rows_total))
    b2 = rnd((SM,), 0.1)
    gamma2 = 1.0 + rnd((SM,), 0.1)
    beta2 = rnd((SM,), 0.1)
    s2 = gamma2 / np.sqrt(1.0 + eps_bn)
    M = s2[:, None] * (W2 @ A1)                       # (SM, n_chans)
    cvec = s2 * (W2 @ b1 + b2) + beta2                # (SM,)

    # temporal depthwise convs: Conv2d(SM, TE*SM, (1,K), groups=SM) + BN (eval)
    TE = temporal_expansion
    C = TE * SM
    M_rep = np.repeat(M, TE, axis=0)                  # out chan o uses chan o//TE
    c_rep = np.repeat(cvec, TE, axis=0)[:, None]      # (C, 1)
    Kmax = max(filters)
    nF = len(filters)
    # taps (BN scale folded in) and the per-channel shift packed in one array:
    # Wb[..., :Kmax] = center-aligned taps, Wb[..., Kmax] = shift
    Wb = np.zeros((nF, C, Kmax + 1), np.float32)
    for fi, K in enumerate(filters):
        w = rnd((C, K), 1.0 / np.sqrt(K))
        bias = rnd((C,), 0.1)
        gamma = 1.0 + rnd((C,), 0.1)
        beta = rnd((C,), 0.1)
        sc = gamma / np.sqrt(1.0 + eps_bn)
        off = (Kmax - K) // 2                         # center-align to Kmax taps
        Wb[fi, :, off:off + K] = sc[:, None] * w      # BN scale folded into taps
        Wb[fi, :, Kmax] = sc * bias + beta

    F = nF * C
    Dtan = (F + 1) * F // 2                           # fc in_features from module
    W_fc = rnd((n_class, Dtan), 1.0 / np.sqrt(Dtan))
    b_fc = rnd((1, n_class), 0.1)

    return dict(
        M_rep=jnp.asarray(M_rep), c_rep=jnp.asarray(c_rep), Wb=jnp.asarray(Wb),
        W_fc=jnp.asarray(W_fc), b_fc=jnp.asarray(b_fc),
        n_filters=nF, Kmax=Kmax, F=F,
    )


# ----------------------------------------------------------------------------
# Full forward pass
# ----------------------------------------------------------------------------
def csnet_forward(x, p):
    F = p["F"]

    # hot path in Pallas: spatial map + temporal convs + per-sample Gram
    gram = csnet_gram(x, p["M_rep"], p["c_rep"], p["Wb"],
                      n_filters=p["n_filters"], Kmax=p["Kmax"])

    # TODO(synk): batched Cholesky on tiny FxF matrices has no clean Pallas TPU
    # primitive; done in plain JAX.  The whole-batch regularized fallback mirrors
    # the torch try/except, which also regularizes the entire batch on failure.
    L = jnp.linalg.cholesky(gram)
    gram_reg = (0.5 * (gram + jnp.swapaxes(gram, 1, 2))
                + 1e-3 * jnp.eye(F, dtype=gram.dtype))
    L = jnp.where(jnp.any(jnp.isnan(L)), jnp.linalg.cholesky(gram_reg), L)

    # tangent space: log-diagonal + row-major lower off-diagonal entries
    d = jnp.log(jnp.diagonal(L, axis1=1, axis2=2))                 # (B, F)
    rows, cols = np.tril_indices(F, k=-1)                          # row-major order
    tangent = jnp.concatenate([d, L[:, rows, cols]], axis=1)       # (B, F(F+1)/2)

    # final fully-connected layer: a few hundred FLOPs -> plain JAX so XLA fuses
    # it with the tangent gather (a dedicated pallas_call would cost more).
    return tangent @ p["W_fc"].T + p["b_fc"]


if __name__ == "__main__":
    key = jax.random.PRNGKey(0)
    kx, kp = jax.random.split(key)

    # small shapes consistent with the module: batch=2, n_chans=8, T=128
    B, n_chans, T, n_class = 2, 8, 128, 4
    x = jax.random.normal(kx, (B, n_chans, T), jnp.float32)

    params = build_params(kp, n_chans=n_chans, n_class=n_class,
                          spatial_expansion=16, spatial_merge=4,
                          filters=[3, 5], temporal_expansion=2)

    fwd = jax.jit(lambda xx: csnet_forward(xx, params))
    out = jax.block_until_ready(fwd(x))
    assert out.shape == (B, n_class), out.shape
    assert bool(jnp.all(jnp.isfinite(out)))
    print("KERNEL_OK")
</pallas_src>

<mosaic_0001>
module attributes {stable_mosaic.version = 11 : i64} {
  func.func @kernel(%arg0: i32, %arg1: memref<8x8x128xf32, #tpu.memory_space<vmem>>, %arg2: memref<8x8xf32, #tpu.memory_space<vmem>>, %arg3: memref<8x1xf32, #tpu.memory_space<vmem>>, %arg4: memref<2x8x6xf32, #tpu.memory_space<vmem>>, %arg5: memref<1x16x128xf32, #tpu.memory_space<vmem>>) attributes {dimension_semantics = [#tpu.dimension_semantics<parallel>], iteration_bounds = array<i64: 1>, scalar_prefetch = 0 : i64, scratch_operands = 0 : i64, tpu.core_type = #tpu.core_type<tc>, window_params = [{transform_indices = @transform_0, window_bounds = array<i64: 8, 8, 128>}, {pipeline_mode = #tpu.pipeline_mode<synchronous>, transform_indices = @transform_1, window_bounds = array<i64: 8, 8>}, {pipeline_mode = #tpu.pipeline_mode<synchronous>, transform_indices = @transform_2, window_bounds = array<i64: 8, 1>}, {pipeline_mode = #tpu.pipeline_mode<synchronous>, transform_indices = @transform_3, window_bounds = array<i64: 2, 8, 6>}, {transform_indices = @transform_4, window_bounds = array<i64: 1, 16, 128>}]} {
    %c0 = arith.constant 0 : index
    %c0_0 = arith.constant 0 : index
    %c0_1 = arith.constant 0 : index
    %0 = vector.load %arg1[%c0, %c0_0, %c0_1] : memref<8x8x128xf32, #tpu.memory_space<vmem>>, vector<8x8x128xf32>
    %1 = arith.truncf %0 : vector<8x8x128xf32> to vector<8x8x128xbf16>
    %c0_2 = arith.constant 0 : index
    %c0_3 = arith.constant 0 : index
    %2 = vector.load %arg2[%c0_2, %c0_3] : memref<8x8xf32, #tpu.memory_space<vmem>>, vector<8x8xf32>
    %3 = arith.truncf %2 : vector<8x8xf32> to vector<8x8xbf16>
    %4 = vector.shape_cast %3 : vector<8x8xbf16> to vector<1x8x8xbf16>
    %5 = vector.broadcast %4 : vector<1x8x8xbf16> to vector<8x8x8xbf16>
    %cst = arith.constant dense<0.000000e+00> : vector<8x8x128xf32>
    %6 = tpu.matmul %5, %1, %cst {dimension_numbers = #tpu.dot_dimension_numbers<[2], [1], [1], [2], [0, 0, 0, 1, 1, 2], [0], [0]>} : vector<8x8x8xbf16>, vector<8x8x128xbf16>, vector<8x8x128xf32> -> vector<8x8x128xf32>
    %c0_4 = arith.constant 0 : index
    %c0_5 = arith.constant 0 : index
    %7 = vector.load %arg3[%c0_4, %c0_5] : memref<8x1xf32, #tpu.memory_space<vmem>>, vector<8x1xf32>
    %8 = vector.shape_cast %7 : vector<8x1xf32> to vector<1x8x1xf32>
    %9 = vector.broadcast %8 : vector<1x8x1xf32> to vector<8x8x128xf32>
    %10 = arith.addf %6, %9 : vector<8x8x128xf32>
    %11 = tpu.iota {dimensions = array<i32: 2>} : vector<1x1x128xi32>
    %c0_6 = arith.constant 0 : index
    %c0_7 = arith.constant 0 : index
    %c0_8 = arith.constant 0 : index
    %12 = vector.load %arg4[%c0_6, %c0_7, %c0_8] : memref<2x8x6xf32, #tpu.memory_space<vmem>>, vector<2x8x6xf32>
    %cst_9 = arith.constant 0.000000e+00 : f32
    %13 = vector.broadcast %cst_9 : f32 to vector<8x8x128xf32>
    %cst_10 = arith.constant 0.000000e+00 : f32
    %14 = vector.broadcast %cst_10 : f32 to vector<8x8x128xf32>
    %c2_i32 = arith.constant 2 : i32
    %15 = tpu.dynamic_rotate %10 by %c2_i32 dim 2 : vector<8x8x128xf32>, i32 -> vector<8x8x128xf32>
    %c2_i32_11 = arith.constant 2 : i32
    %16 = vector.broadcast %c2_i32_11 : i32 to vector<1x1x128xi32>
    %17 = arith.cmpi sge, %11, %16 : vector<1x1x128xi32>
    %cst_12 = arith.constant 0.000000e+00 : f32
    %18 = vector.shape_cast %17 : vector<1x1x128xi1> to vector<1x1x128xi1>
    %19 = vector.broadcast %18 : vector<1x1x128xi1> to vector<8x8x128xi1>
    %20 = vector.broadcast %cst_12 : f32 to vector<8x8x128xf32>
    %21 = arith.select %19, %15, %20 : vector<8x8x128xi1>, vector<8x8x128xf32>
    %22 = vector.extract_strided_slice %12 {offsets = [0, 0, 0], sizes = [1, 8, 1], strides = [1, 1, 1]} : vector<2x8x6xf32> to vector<1x8x1xf32>
    %23 = vector.shape_cast %22 : vector<1x8x1xf32> to vector<8x1xf32>
    %24 = vector.shape_cast %23 : vector<8x1xf32> to vector<1x8x1xf32>
    %25 = vector.broadcast %24 : vector<1x8x1xf32> to vector<8x8x128xf32>
    %26 = arith.mulf %25, %21 : vector<8x8x128xf32>
    %27 = arith.addf %13, %26 : vector<8x8x128xf32>
    %28 = vector.extract_strided_slice %12 {offsets = [1, 0, 0], sizes = [1, 8, 1], strides = [1, 1, 1]} : vector<2x8x6xf32> to vector<1x8x1xf32>
    %29 = vector.shape_cast %28 : vector<1x8x1xf32> to vector<8x1xf32>
    %30 = vector.shape_cast %29 : vector<8x1xf32> to vector<1x8x1xf32>
    %31 = vector.broadcast %30 : vector<1x8x1xf32> to vector<8x8x128xf32>
    %32 = arith.mulf %31, %21 : vector<8x8x128xf32>
    %33 = arith.addf %14, %32 : vector<8x8x128xf32>
    %c1_i32 = arith.constant 1 : i32
    %34 = tpu.dynamic_rotate %10 by %c1_i32 dim 2 : vector<8x8x128xf32>, i32 -> vector<8x8x128xf32>
    %c1_i32_13 = arith.constant 1 : i32
    %35 = vector.broadcast %c1_i32_13 : i32 to vector<1x1x128xi32>
    %36 = arith.cmpi sge, %11, %35 : vector<1x1x128xi32>
    %cst_14 = arith.constant 0.000000e+00 : f32
    %37 = vector.shape_cast %36 : vector<1x1x128xi1> to vector<1x1x128xi1>
    %38 = vector.broadcast %37 : vector<1x1x128xi1> to vector<8x8x128xi1>
    %39 = vector.broadcast %cst_14 : f32 to vector<8x8x128xf32>
    %40 = arith.select %38, %34, %39 : vector<8x8x128xi1>, vector<8x8x128xf32>
    %41 = vector.extract_strided_slice %12 {offsets = [0, 0, 1], sizes = [1, 8, 1], strides = [1, 1, 1]} : vector<2x8x6xf32> to vector<1x8x1xf32>
    %42 = vector.shape_cast %41 : vector<1x8x1xf32> to vector<8x1xf32>
    %43 = vector.shape_cast %42 : vector<8x1xf32> to vector<1x8x1xf32>
    %44 = vector.broadcast %43 : vector<1x8x1xf32> to vector<8x8x128xf32>
    %45 = arith.mulf %44, %40 : vector<8x8x128xf32>
    %46 = arith.addf %27, %45 : vector<8x8x128xf32>
    %47 = vector.extract_strided_slice %12 {offsets = [1, 0, 1], sizes = [1, 8, 1], strides = [1, 1, 1]} : vector<2x8x6xf32> to vector<1x8x1xf32>
    %48 = vector.shape_cast %47 : vector<1x8x1xf32> to vector<8x1xf32>
    %49 = vector.shape_cast %48 : vector<8x1xf32> to vector<1x8x1xf32>
    %50 = vector.broadcast %49 : vector<1x8x1xf32> to vector<8x8x128xf32>
    %51 = arith.mulf %50, %40 : vector<8x8x128xf32>
    %52 = arith.addf %33, %51 : vector<8x8x128xf32>
    %53 = vector.extract_strided_slice %12 {offsets = [0, 0, 2], sizes = [1, 8, 1], strides = [1, 1, 1]} : vector<2x8x6xf32> to vector<1x8x1xf32>
    %54 = vector.shape_cast %53 : vector<1x8x1xf32> to vector<8x1xf32>
    %55 = vector.shape_cast %54 : vector<8x1xf32> to vector<1x8x1xf32>
    %56 = vector.broadcast %55 : vector<1x8x1xf32> to vector<8x8x128xf32>
    %57 = arith.mulf %56, %10 : vector<8x8x128xf32>
    %58 = arith.addf %46, %57 : vector<8x8x128xf32>
    %59 = vector.extract_strided_slice %12 {offsets = [1, 0, 2], sizes = [1, 8, 1], strides = [1, 1, 1]} : vector<2x8x6xf32> to vector<1x8x1xf32>
    %60 = vector.shape_cast %59 : vector<1x8x1xf32> to vector<8x1xf32>
    %61 = vector.shape_cast %60 : vector<8x1xf32> to vector<1x8x1xf32>
    %62 = vector.broadcast %61 : vector<1x8x1xf32> to vector<8x8x128xf32>
    %63 = arith.mulf %62, %10 : vector<8x8x128xf32>
    %64 = arith.addf %52, %63 : vector<8x8x128xf32>
    %c127_i32 = arith.constant 127 : i32
    %65 = tpu.dynamic_rotate %10 by %c127_i32 dim 2 : vector<8x8x128xf32>, i32 -> vector<8x8x128xf32>
    %c127_i32_15 = arith.constant 127 : i32
    %66 = vector.broadcast %c127_i32_15 : i32 to vector<1x1x128xi32>
    %67 = arith.cmpi slt, %11, %66 : vector<1x1x128xi32>
    %cst_16 = arith.constant 0.000000e+00 : f32
    %68 = vector.shape_cast %67 : vector<1x1x128xi1> to vector<1x1x128xi1>
    %69 = vector.broadcast %68 : vector<1x1x128xi1> to vector<8x8x128xi1>
    %70 = vector.broadcast %cst_16 : f32 to vector<8x8x128xf32>
    %71 = arith.select %69, %65, %70 : vector<8x8x128xi1>, vector<8x8x128xf32>
    %72 = vector.extract_strided_slice %12 {offsets = [0, 0, 3], sizes = [1, 8, 1], strides = [1, 1, 1]} : vector<2x8x6xf32> to vector<1x8x1xf32>
    %73 = vector.shape_cast %72 : vector<1x8x1xf32> to vector<8x1xf32>
    %74 = vector.shape_cast %73 : vector<8x1xf32> to vector<1x8x1xf32>
    %75 = vector.broadcast %74 : vector<1x8x1xf32> to vector<8x8x128xf32>
    %76 = arith.mulf %75, %71 : vector<8x8x128xf32>
    %77 = arith.addf %58, %76 : vector<8x8x128xf32>
    %78 = vector.extract_strided_slice %12 {offsets = [1, 0, 3], sizes = [1, 8, 1], strides = [1, 1, 1]} : vector<2x8x6xf32> to vector<1x8x1xf32>
    %79 = vector.shape_cast %78 : vector<1x8x1xf32> to vector<8x1xf32>
    %80 = vector.shape_cast %79 : vector<8x1xf32> to vector<1x8x1xf32>
    %81 = vector.broadcast %80 : vector<1x8x1xf32> to vector<8x8x128xf32>
    %82 = arith.mulf %81, %71 : vector<8x8x128xf32>
    %83 = arith.addf %64, %82 : vector<8x8x128xf32>
    %c126_i32 = arith.constant 126 : i32
    %84 = tpu.dynamic_rotate %10 by %c126_i32 dim 2 : vector<8x8x128xf32>, i32 -> vector<8x8x128xf32>
    %c126_i32_17 = arith.constant 126 : i32
    %85 = vector.broadcast %c126_i32_17 : i32 to vector<1x1x128xi32>
    %86 = arith.cmpi slt, %11, %85 : vector<1x1x128xi32>
    %cst_18 = arith.constant 0.000000e+00 : f32
    %87 = vector.shape_cast %86 : vector<1x1x128xi1> to vector<1x1x128xi1>
    %88 = vector.broadcast %87 : vector<1x1x128xi1> to vector<8x8x128xi1>
    %89 = vector.broadcast %cst_18 : f32 to vector<8x8x128xf32>
    %90 = arith.select %88, %84, %89 : vector<8x8x128xi1>, vector<8x8x128xf32>
    %91 = vector.extract_strided_slice %12 {offsets = [0, 0, 4], sizes = [1, 8, 1], strides = [1, 1, 1]} : vector<2x8x6xf32> to vector<1x8x1xf32>
    %92 = vector.shape_cast %91 : vector<1x8x1xf32> to vector<8x1xf32>
    %93 = vector.shape_cast %92 : vector<8x1xf32> to vector<1x8x1xf32>
    %94 = vector.broadcast %93 : vector<1x8x1xf32> to vector<8x8x128xf32>
    %95 = arith.mulf %94, %90 : vector<8x8x128xf32>
    %96 = arith.addf %77, %95 : vector<8x8x128xf32>
    %97 = vector.extract_strided_slice %12 {offsets = [1, 0, 4], sizes = [1, 8, 1], strides = [1, 1, 1]} : vector<2x8x6xf32> to vector<1x8x1xf32>
    %98 = vector.shape_cast %97 : vector<1x8x1xf32> to vector<8x1xf32>
    %99 = vector.shape_cast %98 : vector<8x1xf32> to vector<1x8x1xf32>
    %100 = vector.broadcast %99 : vector<1x8x1xf32> to vector<8x8x128xf32>
    %101 = arith.mulf %100, %90 : vector<8x8x128xf32>
    %102 = arith.addf %83, %101 : vector<8x8x128xf32>
    %103 = vector.extract_strided_slice %12 {offsets = [0, 0, 5], sizes = [1, 8, 1], strides = [1, 1, 1]} : vector<2x8x6xf32> to vector<1x8x1xf32>
    %104 = vector.shape_cast %103 : vector<1x8x1xf32> to vector<8x1xf32>
    %105 = vector.shape_cast %104 : vector<8x1xf32> to vector<1x8x1xf32>
    %106 = vector.broadcast %105 : vector<1x8x1xf32> to vector<8x8x128xf32>
    %107 = arith.addf %96, %106 : vector<8x8x128xf32>
    %108 = vector.extract_strided_slice %12 {offsets = [1, 0, 5], sizes = [1, 8, 1], strides = [1, 1, 1]} : vector<2x8x6xf32> to vector<1x8x1xf32>
    %109 = vector.shape_cast %108 : vector<1x8x1xf32> to vector<8x1xf32>
    %110 = vector.shape_cast %109 : vector<8x1xf32> to vector<1x8x1xf32>
    %111 = vector.broadcast %110 : vector<1x8x1xf32> to vector<8x8x128xf32>
    %112 = arith.addf %102, %111 : vector<8x8x128xf32>
    %113 = tpu.concatenate %107, %112 in 1 : vector<8x8x128xf32>, vector<8x8x128xf32> -> vector<8x16x128xf32>
    %114 = arith.truncf %113 : vector<8x16x128xf32> to vector<8x16x128xbf16>
    %cst_19 = arith.constant dense<0.000000e+00> : vector<8x16x16xf32>
    %115 = tpu.matmul %114, %114, %cst_19 {dimension_numbers = #tpu.dot_dimension_numbers<[2], [2], [1], [1], [0, 0, 0, 1, 1, 1], [0], [0]>} : vector<8x16x128xbf16>, vector<8x16x128xbf16>, vector<8x16x16xf32> -> vector<8x16x16xf32>
    %cst_20 = arith.constant 0.00787401571 : f32
    %116 = vector.broadcast %cst_20 : f32 to vector<8x16x16xf32>
    %117 = arith.mulf %115, %116 : vector<8x16x16xf32>
    %118 = vector.extract_strided_slice %117 {offsets = [0, 0, 0], sizes = [1, 16, 16], strides = [1, 1, 1]} : vector<8x16x16xf32> to vector<1x16x16xf32>
    %119 = vector.shape_cast %118 : vector<1x16x16xf32> to vector<16x16xf32>
    %120 = vector.extract_strided_slice %117 {offsets = [1, 0, 0], sizes = [1, 16, 16], strides = [1, 1, 1]} : vector<8x16x16xf32> to vector<1x16x16xf32>
    %121 = vector.shape_cast %120 : vector<1x16x16xf32> to vector<16x16xf32>
    %122 = vector.extract_strided_slice %117 {offsets = [2, 0, 0], sizes = [1, 16, 16], strides = [1, 1, 1]} : vector<8x16x16xf32> to vector<1x16x16xf32>
    %123 = vector.shape_cast %122 : vector<1x16x16xf32> to vector<16x16xf32>
    %124 = vector.extract_strided_slice %117 {offsets = [3, 0, 0], sizes = [1, 16, 16], strides = [1, 1, 1]} : vector<8x16x16xf32> to vector<1x16x16xf32>
    %125 = vector.shape_cast %124 : vector<1x16x16xf32> to vector<16x16xf32>
    %126 = vector.extract_strided_slice %117 {offsets = [4, 0, 0], sizes = [1, 16, 16], strides = [1, 1, 1]} : vector<8x16x16xf32> to vector<1x16x16xf32>
    %127 = vector.shape_cast %126 : vector<1x16x16xf32> to vector<16x16xf32>
    %128 = vector.extract_strided_slice %117 {offsets = [5, 0, 0], sizes = [1, 16, 16], strides = [1, 1, 1]} : vector<8x16x16xf32> to vector<1x16x16xf32>
    %129 = vector.shape_cast %128 : vector<1x16x16xf32> to vector<16x16xf32>
    %130 = vector.extract_strided_slice %117 {offsets = [6, 0, 0], sizes = [1, 16, 16], strides = [1, 1, 1]} : vector<8x16x16xf32> to vector<1x16x16xf32>
    %131 = vector.shape_cast %130 : vector<1x16x16xf32> to vector<16x16xf32>
    %132 = vector.extract_strided_slice %117 {offsets = [7, 0, 0], sizes = [1, 16, 16], strides = [1, 1, 1]} : vector<8x16x16xf32> to vector<1x16x16xf32>
    %133 = vector.shape_cast %132 : vector<1x16x16xf32> to vector<16x16xf32>
    %134 = tpu.concatenate %119, %121, %123, %125, %127, %129, %131, %133 in 1 : vector<16x16xf32>, vector<16x16xf32>, vector<16x16xf32>, vector<16x16xf32>, vector<16x16xf32>, vector<16x16xf32>, vector<16x16xf32>, vector<16x16xf32> -> vector<16x128xf32>
    %c0_21 = arith.constant 0 : index
    %c0_22 = arith.constant 0 : index
    %c0_23 = arith.constant 0 : index
    %135 = vector.load %arg5[%c0_21, %c0_22, %c0_23] : memref<1x16x128xf32, #tpu.memory_space<vmem>>, vector<1x16x128xf32>
    %136 = vector.shape_cast %135 : vector<1x16x128xf32> to vector<16x128xf32>
    %137 = vector.shape_cast %134 : vector<16x128xf32> to vector<1x16x128xf32>
    tpu.vector_store %arg5[%c0_21, %c0_22, %c0_23], %137 {strides = array<i32>} : memref<1x16x128xf32, #tpu.memory_space<vmem>>, vector<1x16x128xf32>,
    return
  }
  func.func @transform_0(%arg0: i32) -> (i32, i32, i32) {
    %c0_i32 = arith.constant 0 : i32
    %c0_i32_0 = arith.constant 0 : i32
    %c0_i32_1 = arith.constant 0 : i32
    return %arg0, %c0_i32, %c0_i32_0 : i32, i32, i32
  }
  func.func @transform_1(%arg0: i32) -> (i32, i32) {
    %c0_i32 = arith.constant 0 : i32
    %c0_i32_0 = arith.constant 0 : i32
    %c0_i32_1 = arith.constant 0 : i32
    return %c0_i32, %c0_i32_0 : i32, i32
  }
  func.func @transform_2(%arg0: i32) -> (i32, i32) {
    %c0_i32 = arith.constant 0 : i32
    %c0_i32_0 = arith.constant 0 : i32
    %c0_i32_1 = arith.constant 0 : i32
    return %c0_i32, %c0_i32_0 : i32, i32
  }
  func.func @transform_3(%arg0: i32) -> (i32, i32, i32) {
    %c0_i32 = arith.constant 0 : i32
    %c0_i32_0 = arith.constant 0 : i32
    %c0_i32_1 = arith.constant 0 : i32
    %c0_i32_2 = arith.constant 0 : i32
    return %c0_i32, %c0_i32_0, %c0_i32_1 : i32, i32, i32
  }
  func.func @transform_4(%arg0: i32) -> (i32, i32, i32) {
    %c0_i32 = arith.constant 0 : i32
    %c0_i32_0 = arith.constant 0 : i32
    %c0_i32_1 = arith.constant 0 : i32
    return %arg0, %c0_i32, %c0_i32_0 : i32, i32, i32
  }
}

</mosaic_0001>

<llo_original>
// kernel: custom-call.8
$region0: #{custom-call.8}
  %s0 = inlined_call_operand.vmem [shape: f32[2,16,16], index: 0, kind: input, shape index: {}]
  %s1 = inlined_call_operand.vmem [shape: f32[2,16,16], index: 1, kind: output, shape index: {}]
  $region1: #{custom-call.8} parent=0
    #allocation0 [shape = 'u8[16384]{0}', space=vmem, size = 0x4000, scoped, tag = 'operand span for operand 0']
    #allocation1 [shape = 'u8[16384]{0}', space=vmem, size = 0x4000, scoped, tag = 'operand span for operand 1']
    loop: start=0, step=1, limit=4
    $region2: #{custom-call.8} parent=1 // loop_pre_header
      _
    $region3: #{custom-call.8} parent=1 // loop_header
      %s3 = sphi 0, %s7
      %p4 = scmp.ge.s32.totalorder %s3, 4
      %s10 = sphi 0, %s29
      %s11 = sphi 0, %s25
      %s12 = sphi 0, %s21
      %s13 = sphi 0, %s10
      %s14 = sphi 0, %s11
      %s15 = sphi 0, %s12
      %s16 = sphi 0, %s13
      %s17 = sphi 0, %s14
      %s18 = sphi 0, %s15
    $region4: #{custom-call.8} parent=1 // loop_header_branch
      %6 = sbr.rel (%p4) target = $region8
    $region5: #{custom-call.8} parent=1 // loop_body
      %s8 = ssub.s32 %s3, 1
      %s9 = ssub.s32 %s3, 2
      %s19 = sadd.s32 1, %s12
      %p20 = scmp.ge.s32.totalorder %s19, 1
      %s21 = scalar_select %p20, 0, %s19
      %s22 = sadd.s32 1, %s11
      %s23 = scalar_select %p20, %s22, %s11
      %p24 = scmp.ge.s32.totalorder %s23, 1
      %s25 = scalar_select %p24, 0, %s23
      %s26 = sadd.s32 1, %s10
      %s27 = scalar_select %p24, %s26, %s10
      %p28 = scmp.ge.s32.totalorder %s27, 2
      %s29 = scalar_select %p28, 0, %s27
      %p30 = scmp.le.s32.totalorder 1, %s3
      %p31 = scmp.lt.s32.totalorder %s3, 3
      %p32 = pnand %p30, %p31
      %p33 = pneg %p32
      // Predicated region
      $region9: #{custom-call.8} parent=5 // pred_check
        _
      $region10: #{custom-call.8} parent=5 // pred_check_branch
        %35 = sbr.rel (%p32) target = $region12
      $region11: #{custom-call.8} parent=5 // pred_region
        %s36 = ssub.s32 %s3, 1
      $region12: #{custom-call.8} parent=5 // pred_fallthru
        _
      %p37 = scmp.lt.s32.totalorder %s3, 2
      // Predicated region
      $region13: #{custom-call.8} parent=5 // pred_check
        %p38 = pneg %p37
      $region14: #{custom-call.8} parent=5 // pred_check_branch
        %40 = sbr.rel (%p38) target = $region16
      $region15: #{custom-call.8} parent=5 // pred_region
        %s41 = sand.u32 %s3, 1
        %s42 = sand.u32 %s3, 1
        %s43 = smul.addr %s42, 16
        %s44 = scalar_lea.vmem [#allocation0], %s43
        %s45 = sadd.s32 %s12, %s11
        %s46 = smul.addr %s10, 2
        %s47 = sadd.s32 %s45, %s46
        %s48 = smul.addr %s47, 8
        %s49 = scalar_lea.vmem %s0, %s48
        // Predicated region
        $region17: #{custom-call.8} parent=15 // pred_check
          _
        $region18: #{custom-call.8} parent=15 // pred_check_branch
          %51 = sbr.rel (0) target = $region20
        $region19: #{custom-call.8} parent=15 // pred_region
          // Predicated region
          $region21: #{custom-call.8} parent=19 // pred_check
            _
          $region22: #{custom-call.8} parent=19 // pred_check_branch
            %53 = sbr.rel (0) target = $region24
          $region23: #{custom-call.8} parent=19 // pred_region
            // Predicated region
            $region36: #{custom-call.8} parent=23 // pred_check
              _
            $region37: #{custom-call.8} parent=23 // pred_check_branch
              %71 = sbr.rel (0) target = $region39
            $region38: #{custom-call.8} parent=23 // pred_region
              loop: start=0, step=1, limit=1
              $region40: #{custom-call.8} parent=38 // loop_pre_header
                _
              $region41: #{custom-call.8} parent=38 // loop_header
                %s73 = sphi 0, %s77
                %p74 = scmp.ge.s32.totalorder %s73, 1
                %s78 = sphi %s49, %s49
                %s79 = sphi %s44, %s44
              $region42: #{custom-call.8} parent=38 // loop_header_branch
                %76 = sbr.rel (%p74) target = $region46
              $region43: #{custom-call.8} parent=38 // loop_body
                %v80 = vld [vmem:[%s78] sm:$0xff]
                %81 = vst [vmem:[%s79] sm:$0xff] %v80
                %v82 = vld [vmem:[%s78 + $0x8] sm:$0xff]
                %83 = vst [vmem:[%s79 + $0x8] sm:$0xff] %v82
              $region44: #{custom-call.8} parent=38 // loop_footer
                %s77 = sadd.s32 1, %s73
              $region45: #{custom-call.8} parent=38 // loop_footer_branch
                %72 = sbr.rel target = $region41
              $region46: #{custom-call.8} parent=38 // loop_exit
                _
            $region39: #{custom-call.8} parent=23 // pred_fallthru
              _
            // Predicated region
            $region47: #{custom-call.8} parent=23 // pred_check
              _
            $region48: #{custom-call.8} parent=23 // pred_check_branch
              %85 = sbr.rel target = $region50
            $region49: #{custom-call.8} parent=23 // pred_region
              _
            $region50: #{custom-call.8} parent=23 // pred_fallthru
              _
          $region24: #{custom-call.8} parent=19 // pred_fallthru
            _
          // Predicated region
          $region25: #{custom-call.8} parent=19 // pred_check
            _
          $region26: #{custom-call.8} parent=19 // pred_check_branch
            %55 = sbr.rel target = $region28
          $region27: #{custom-call.8} parent=19 // pred_region
            %s57 = ssub.s32 256, 1
            loop: start=0, step=1, limit=1
            $region29: #{custom-call.8} parent=27 // loop_pre_header
              _
            $region30: #{custom-call.8} parent=27 // loop_header
              %s59 = sphi 0, %s63
              %p60 = scmp.ge.s32.totalorder %s59, 1
              %s64 = sphi %s49, %s49
              %s65 = sphi %s44, %s44
            $region31: #{custom-call.8} parent=27 // loop_header_branch
              %62 = sbr.rel (%p60) target = $region35
            $region32: #{custom-call.8} parent=27 // loop_body
              %v66 = vld [vmem:[%s64] sm:%s57]
              %67 = vst [vmem:[%s65] sm:%s57] %v66
              %v68 = vld [vmem:[%s64 + $0x8] sm:%s57]
              %69 = vst [vmem:[%s65 + $0x8] sm:%s57] %v68
            $region33: #{custom-call.8} parent=27 // loop_footer
              %s63 = sadd.s32 1, %s59
            $region34: #{custom-call.8} parent=27 // loop_footer_branch
              %58 = sbr.rel target = $region30
            $region35: #{custom-call.8} parent=27 // loop_exit
              _
          $region28: #{custom-call.8} parent=19 // pred_fallthru
            _
        $region20: #{custom-call.8} parent=15 // pred_fallthru
          _
        %86 = vnop
      $region16: #{custom-call.8} parent=5 // pred_fallthru
        _
      %p87 = scmp.le.s32.totalorder 1, %s3
      %p88 = scmp.lt.s32.totalorder %s3, 3
      %p89 = pnand %p87, %p88
      %p90 = pneg %p89
      // Predicated region
      $region51: #{custom-call.8} parent=5 // pred_check
        _
      $region52: #{custom-call.8} parent=5 // pred_check_branch
        %92 = sbr.rel (%p89) target = $region54
      $region53: #{custom-call.8} parent=5 // pred_region
        %s93 = ssub.s32 %s3, 1
        %s94 = sand.u32 %s8, 1
        %s95 = sand.u32 %s8, 1
        %s96 = smul.addr %s95, 16
        %s97 = scalar_lea.vmem [#allocation0], %s96
        %s98 = sand.u32 %s8, 1
        %s99 = sand.u32 %s8, 1
        %s100 = smul.addr %s99, 16
        %s101 = scalar_lea.vmem [#allocation0], %s100
        %s102 = sand.u32 %s8, 1
        %s103 = sand.u32 %s8, 1
        %s104 = smul.addr %s103, 16
        %s105 = scalar_lea.vmem [#allocation1], %s104
        %106 = vst [vmem:[%s105] sm:$0xff] 0.0
        %s107 = scalar_lea.vmem %s105, 8 [#allocation1]
        %108 = vst [vmem:[%s107] sm:$0xff] 0.0
        %vm109 = vcmask 7168
        %v110 = vld [vmem:[%s105] ss:$0 sm:$0xff]
        %v111 = vld [vmem:[%s97] ss:$0 sm:$0xff]
        %v112 = vmul.f32 %v110, %v110
        %113 = vadd.xlane.f32.xlu0 %v112
        %v114 = vpop.xlane.xlu0 %113
        %v115 = vsub.f32 %v111, %v114
        %v116 = vrsqrt.pop %v115
        %v117 = vmul.f32 %v116, %v115
        %v118 = vmul.f32 %v117, %v116
        %v119 = vmul.f32 0.5, %v118
        %v120 = vsub.f32 1.5, %v119
        %v121 = vmul.f32 %v116, %v120
        %vm122 = vweird.f32 %v115
        %vm123 = vweird.f32 %v116
        %vm124 = vmor %vm122, %vm123
        %v125 = vsel %vm124, %v116, %v121
        %v126 = vld [vmem:[%s97] sm:$0xff]
        %v127 = vld [vmem:[%s105] sm:$0xff]
        %v128 = vmul.f32 %v127, %v110
        %129 = vadd.xlane.f32.xlu0 %v128
        %v130 = vpop.xlane.xlu0 %129
        %v131 = vsub.f32 %v126, %v130
        %v132 = vmul.f32 %v131, %v125
        %v133 = vsel %vm109, %v132, 0.0
        %v134 = vadd.f32 %v127, %v133
        %135 = vst [vmem:[%s105] sm:$0xff] %v134
        %s136 = scalar_lea.vmem %s97, 8 [#allocation0]
        %v137 = vld [vmem:[%s136] sm:$0xff]
        %s138 = scalar_lea.vmem %s105, 8 [#allocation1]
        %v139 = vld [vmem:[%s138] sm:$0xff]
        %v140 = vmul.f32 %v139, %v110
        %141 = vadd.xlane.f32.xlu0 %v140
        %v142 = vpop.xlane.xlu0 %141
        %v143 = vsub.f32 %v137, %v142
        %v144 = vmul.f32 %v143, %v125
        %v145 = vsel %vm109, %v144, 0.0
        %v146 = vadd.f32 %v139, %v145
        %s147 = scalar_lea.vmem %s105, 8 [#allocation1]
        %148 = vst [vmem:[%s147] sm:$0xff] %v146
        %vm149 = vcmask 15368
        %s150 = scalar_lea.vmem %s105, 1 [#allocation1]
        %v151 = vld [vmem:[%s150] ss:$0 sm:$0xff]
        %s152 = scalar_lea.vmem %s97, 1 [#allocation0]
        %v153 = vld [vmem:[%s152] ss:$0 sm:$0xff]
        %v154 = vmul.f32 %v151, %v151
        %155 = vadd.xlane.f32.xlu0 %v154
        %v156 = vpop.xlane.xlu0 %155
        %v157 = vsub.f32 %v153, %v156
        %v158 = vrsqrt.pop %v157
        %v159 = vmul.f32 %v158, %v157
        %v160 = vmul.f32 %v159, %v158
        %v161 = vmul.f32 0.5, %v160
        %v162 = vsub.f32 1.5, %v161
        %v163 = vmul.f32 %v158, %v162
        %vm164 = vweird.f32 %v157
        %vm165 = vweird.f32 %v158
        %vm166 = vmor %vm164, %vm165
        %v167 = vsel %vm166, %v158, %v163
        %v168 = vld [vmem:[%s97] sm:$0xff]
        %v169 = vld [vmem:[%s105] sm:$0xff]
        %v170 = vmul.f32 %v169, %v151
        %171 = vadd.xlane.f32.xlu0 %v170
        %v172 = vpop.xlane.xlu0 %171
        %v173 = vsub.f32 %v168, %v172
        %v174 = vmul.f32 %v173, %v167
        %vm175 = vcmask 1047553
        %vm176 = vmand %vm149, %vm175
        %v177 = vsel %vm176, %v174, 0.0
        %v178 = vadd.f32 %v169, %v177
        %179 = vst [vmem:[%s105] sm:$0xff] %v178
        %s180 = scalar_lea.vmem %s97, 8 [#allocation0]
        %v181 = vld [vmem:[%s180] sm:$0xff]
        %s182 = scalar_lea.vmem %s105, 8 [#allocation1]
        %v183 = vld [vmem:[%s182] sm:$0xff]
        %v184 = vmul.f32 %v183, %v151
        %185 = vadd.xlane.f32.xlu0 %v184
        %v186 = vpop.xlane.xlu0 %185
        %v187 = vsub.f32 %v181, %v186
        %v188 = vmul.f32 %v187, %v167
        %v189 = vsel %vm149, %v188, 0.0
        %v190 = vadd.f32 %v183, %v189
        %s191 = scalar_lea.vmem %s105, 8 [#allocation1]
        %192 = vst [vmem:[%s191] sm:$0xff] %v190
        %vm193 = vcmask 23568
        %s194 = scalar_lea.vmem %s105, 2 [#allocation1]
        %v195 = vld [vmem:[%s194] ss:$0 sm:$0xff]
        %s196 = scalar_lea.vmem %s97, 2 [#allocation0]
        %v197 = vld [vmem:[%s196] ss:$0 sm:$0xff]
        %v198 = vmul.f32 %v195, %v195
        %199 = vadd.xlane.f32.xlu0 %v198
        %v200 = vpop.xlane.xlu0 %199
        %v201 = vsub.f32 %v197, %v200
        %v202 = vrsqrt.pop %v201
        %v203 = vmul.f32 %v202, %v201
        %v204 = vmul.f32 %v203, %v202
        %v205 = vmul.f32 0.5, %v204
        %v206 = vsub.f32 1.5, %v205
        %v207 = vmul.f32 %v202, %v206
        %vm208 = vweird.f32 %v201
        %vm209 = vweird.f32 %v202
        %vm210 = vmor %vm208, %vm209
        %v211 = vsel %vm210, %v202, %v207
        %v212 = vld [vmem:[%s97] sm:$0xff]
        %v213 = vld [vmem:[%s105] sm:$0xff]
        %v214 = vmul.f32 %v213, %v195
        %215 = vadd.xlane.f32.xlu0 %v214
        %v216 = vpop.xlane.xlu0 %215
        %v217 = vsub.f32 %v212, %v216
        %v218 = vmul.f32 %v217, %v211
        %vm219 = vcmask 1047554
        %vm220 = vmand %vm193, %vm219
        %v221 = vsel %vm220, %v218, 0.0
        %v222 = vadd.f32 %v213, %v221
        %223 = vst [vmem:[%s105] sm:$0xff] %v222
        %s224 = scalar_lea.vmem %s97, 8 [#allocation0]
        %v225 = vld [vmem:[%s224] sm:$0xff]
        %s226 = scalar_lea.vmem %s105, 8 [#allocation1]
        %v227 = vld [vmem:[%s226] sm:$0xff]
        %v228 = vmul.f32 %v227, %v195
        %229 = vadd.xlane.f32.xlu0 %v228
        %v230 = vpop.xlane.xlu0 %229
        %v231 = vsub.f32 %v225, %v230
        %v232 = vmul.f32 %v231, %v211
        %v233 = vsel %vm193, %v232, 0.0
        %v234 = vadd.f32 %v227, %v233
        %s235 = scalar_lea.vmem %s105, 8 [#allocation1]
        %236 = vst [vmem:[%s235] sm:$0xff] %v234
        %vm237 = vcmask 31768
        %s238 = scalar_lea.vmem %s105, 3 [#allocation1]
        %v239 = vld [vmem:[%s238] ss:$0 sm:$0xff]
        %s240 = scalar_lea.vmem %s97, 3 [#allocation0]
        %v241 = vld [vmem:[%s240] ss:$0 sm:$0xff]
        %v242 = vmul.f32 %v239, %v239
        %243 = vadd.xlane.f32.xlu0 %v242
        %v244 = vpop.xlane.xlu0 %243
        %v245 = vsub.f32 %v241, %v244
        %v246 = vrsqrt.pop %v245
        %v247 = vmul.f32 %v246, %v245
        %v248 = vmul.f32 %v247, %v246
        %v249 = vmul.f32 0.5, %v248
        %v250 = vsub.f32 1.5, %v249
        %v251 = vmul.f32 %v246, %v250
        %vm252 = vweird.f32 %v245
        %vm253 = vweird.f32 %v246
        %vm254 = vmor %vm252, %vm253
        %v255 = vsel %vm254, %v246, %v251
        %v256 = vld [vmem:[%s97] sm:$0xff]
        %v257 = vld [vmem:[%s105] sm:$0xff]
        %v258 = vmul.f32 %v257, %v239
        %259 = vadd.xlane.f32.xlu0 %v258
        %v260 = vpop.xlane.xlu0 %259
        %v261 = vsub.f32 %v256, %v260
        %v262 = vmul.f32 %v261, %v255
        %vm263 = vcmask 1047555
        %vm264 = vmand %vm237, %vm263
        %v265 = vsel %vm264, %v262, 0.0
        %v266 = vadd.f32 %v257, %v265
        %267 = vst [vmem:[%s105] sm:$0xff] %v266
        %s268 = scalar_lea.vmem %s97, 8 [#allocation0]
        %v269 = vld [vmem:[%s268] sm:$0xff]
        %s270 = scalar_lea.vmem %s105, 8 [#allocation1]
        %v271 = vld [vmem:[%s270] sm:$0xff]
        %v272 = vmul.f32 %v271, %v239
        %273 = vadd.xlane.f32.xlu0 %v272
        %v274 = vpop.xlane.xlu0 %273
        %v275 = vsub.f32 %v269, %v274
        %v276 = vmul.f32 %v275, %v255
        %v277 = vsel %vm237, %v276, 0.0
        %v278 = vadd.f32 %v271, %v277
        %s279 = scalar_lea.vmem %s105, 8 [#allocation1]
        %280 = vst [vmem:[%s279] sm:$0xff] %v278
        %vm281 = vcmask 39968
        %s282 = scalar_lea.vmem %s105, 4 [#allocation1]
        %v283 = vld [vmem:[%s282] ss:$0 sm:$0xff]
        %s284 = scalar_lea.vmem %s97, 4 [#allocation0]
        %v285 = vld [vmem:[%s284] ss:$0 sm:$0xff]
        %v286 = vmul.f32 %v283, %v283
        %287 = vadd.xlane.f32.xlu0 %v286
        %v288 = vpop.xlane.xlu0 %287
        %v289 = vsub.f32 %v285, %v288
        %v290 = vrsqrt.pop %v289
        %v291 = vmul.f32 %v290, %v289
        %v292 = vmul.f32 %v291, %v290
        %v293 = vmul.f32 0.5, %v292
        %v294 = vsub.f32 1.5, %v293
        %v295 = vmul.f32 %v290, %v294
        %vm296 = vweird.f32 %v289
        %vm297 = vweird.f32 %v290
        %vm298 = vmor %vm296, %vm297
        %v299 = vsel %vm298, %v290, %v295
        %v300 = vld [vmem:[%s97] sm:$0xff]
        %v301 = vld [vmem:[%s105] sm:$0xff]
        %v302 = vmul.f32 %v301, %v283
        %303 = vadd.xlane.f32.xlu0 %v302
        %v304 = vpop.xlane.xlu0 %303
        %v305 = vsub.f32 %v300, %v304
        %v306 = vmul.f32 %v305, %v299
        %vm307 = vcmask 1047556
        %vm308 = vmand %vm281, %vm307
        %v309 = vsel %vm308, %v306, 0.0
        %v310 = vadd.f32 %v301, %v309
        %311 = vst [vmem:[%s105] sm:$0xff] %v310
        %s312 = scalar_lea.vmem %s97, 8 [#allocation0]
        %v313 = vld [vmem:[%s312] sm:$0xff]
        %s314 = scalar_lea.vmem %s105, 8 [#allocation1]
        %v315 = vld [vmem:[%s314] sm:$0xff]
        %v316 = vmul.f32 %v315, %v283
        %317 = vadd.xlane.f32.xlu0 %v316
        %v318 = vpop.xlane.xlu0 %317
        %v319 = vsub.f32 %v313, %v318
        %v320 = vmul.f32 %v319, %v299
        %v321 = vsel %vm281, %v320, 0.0
        %v322 = vadd.f32 %v315, %v321
        %s323 = scalar_lea.vmem %s105, 8 [#allocation1]
        %324 = vst [vmem:[%s323] sm:$0xff] %v322
        %vm325 = vcmask 48168
        %s326 = scalar_lea.vmem %s105, 5 [#allocation1]
        %v327 = vld [vmem:[%s326] ss:$0 sm:$0xff]
        %s328 = scalar_lea.vmem %s97, 5 [#allocation0]
        %v329 = vld [vmem:[%s328] ss:$0 sm:$0xff]
        %v330 = vmul.f32 %v327, %v327
        %331 = vadd.xlane.f32.xlu0 %v330
        %v332 = vpop.xlane.xlu0 %331
        %v333 = vsub.f32 %v329, %v332
        %v334 = vrsqrt.pop %v333
        %v335 = vmul.f32 %v334, %v333
        %v336 = vmul.f32 %v335, %v334
        %v337 = vmul.f32 0.5, %v336
        %v338 = vsub.f32 1.5, %v337
        %v339 = vmul.f32 %v334, %v338
        %vm340 = vweird.f32 %v333
        %vm341 = vweird.f32 %v334
        %vm342 = vmor %vm340, %vm341
        %v343 = vsel %vm342, %v334, %v339
        %v344 = vld [vmem:[%s97] sm:$0xff]
        %v345 = vld [vmem:[%s105] sm:$0xff]
        %v346 = vmul.f32 %v345, %v327
        %347 = vadd.xlane.f32.xlu0 %v346
        %v348 = vpop.xlane.xlu0 %347
        %v349 = vsub.f32 %v344, %v348
        %v350 = vmul.f32 %v349, %v343
        %vm351 = vcmask 1047557
        %vm352 = vmand %vm325, %vm351
        %v353 = vsel %vm352, %v350, 0.0
        %v354 = vadd.f32 %v345, %v353
        %355 = vst [vmem:[%s105] sm:$0xff] %v354
        %s356 = scalar_lea.vmem %s97, 8 [#allocation0]
        %v357 = vld [vmem:[%s356] sm:$0xff]
        %s358 = scalar_lea.vmem %s105, 8 [#allocation1]
        %v359 = vld [vmem:[%s358] sm:$0xff]
        %v360 = vmul.f32 %v359, %v327
        %361 = vadd.xlane.f32.xlu0 %v360
        %v362 = vpop.xlane.xlu0 %361
        %v363 = vsub.f32 %v357, %v362
        %v364 = vmul.f32 %v363, %v343
        %v365 = vsel %vm325, %v364, 0.0
        %v366 = vadd.f32 %v359, %v365
        %s367 = scalar_lea.vmem %s105, 8 [#allocation1]
        %368 = vst [vmem:[%s367] sm:$0xff] %v366
        %vm369 = vcmask 56368
        %s370 = scalar_lea.vmem %s105, 6 [#allocation1]
        %v371 = vld [vmem:[%s370] ss:$0 sm:$0xff]
        %s372 = scalar_lea.vmem %s97, 6 [#allocation0]
        %v373 = vld [vmem:[%s372] ss:$0 sm:$0xff]
        %v374 = vmul.f32 %v371, %v371
        %375 = vadd.xlane.f32.xlu0 %v374
        %v376 = vpop.xlane.xlu0 %375
        %v377 = vsub.f32 %v373, %v376
        %v378 = vrsqrt.pop %v377
        %v379 = vmul.f32 %v378, %v377
        %v380 = vmul.f32 %v379, %v378
        %v381 = vmul.f32 0.5, %v380
        %v382 = vsub.f32 1.5, %v381
        %v383 = vmul.f32 %v378, %v382
        %vm384 = vweird.f32 %v377
        %vm385 = vweird.f32 %v378
        %vm386 = vmor %vm384, %vm385
        %v387 = vsel %vm386, %v378, %v383
        %v388 = vld [vmem:[%s97] sm:$0xff]
        %v389 = vld [vmem:[%s105] sm:$0xff]
        %v390 = vmul.f32 %v389, %v371
        %391 = vadd.xlane.f32.xlu0 %v390
        %v392 = vpop.xlane.xlu0 %391
        %v393 = vsub.f32 %v388, %v392
        %v394 = vmul.f32 %v393, %v387
        %vm395 = vcmask 1047558
        %vm396 = vmand %vm369, %vm395
        %v397 = vsel %vm396, %v394, 0.0
        %v398 = vadd.f32 %v389, %v397
        %399 = vst [vmem:[%s105] sm:$0xff] %v398
        %s400 = scalar_lea.vmem %s97, 8 [#allocation0]
        %v401 = vld [vmem:[%s400] sm:$0xff]
        %s402 = scalar_lea.vmem %s105, 8 [#allocation1]
        %v403 = vld [vmem:[%s402] sm:$0xff]
        %v404 = vmul.f32 %v403, %v371
        %405 = vadd.xlane.f32.xlu0 %v404
        %v406 = vpop.xlane.xlu0 %405
        %v407 = vsub.f32 %v401, %v406
        %v408 = vmul.f32 %v407, %v387
        %v409 = vsel %vm369, %v408, 0.0
        %v410 = vadd.f32 %v403, %v409
        %s411 = scalar_lea.vmem %s105, 8 [#allocation1]
        %412 = vst [vmem:[%s411] sm:$0xff] %v410
        %vm413 = vcmask 64568
        %s414 = scalar_lea.vmem %s105, 7 [#allocation1]
        %v415 = vld [vmem:[%s414] ss:$0 sm:$0xff]
        %s416 = scalar_lea.vmem %s97, 7 [#allocation0]
        %v417 = vld [vmem:[%s416] ss:$0 sm:$0xff]
        %v418 = vmul.f32 %v415, %v415
        %419 = vadd.xlane.f32.xlu0 %v418
        %v420 = vpop.xlane.xlu0 %419
        %v421 = vsub.f32 %v417, %v420
        %v422 = vrsqrt.pop %v421
        %v423 = vmul.f32 %v422, %v421
        %v424 = vmul.f32 %v423, %v422
        %v425 = vmul.f32 0.5, %v424
        %v426 = vsub.f32 1.5, %v425
        %v427 = vmul.f32 %v422, %v426
        %vm428 = vweird.f32 %v421
        %vm429 = vweird.f32 %v422
        %vm430 = vmor %vm428, %vm429
        %v431 = vsel %vm430, %v422, %v427
        %v432 = vld [vmem:[%s97] sm:$0xff]
        %v433 = vld [vmem:[%s105] sm:$0xff]
        %v434 = vmul.f32 %v433, %v415
        %435 = vadd.xlane.f32.xlu0 %v434
        %v436 = vpop.xlane.xlu0 %435
        %v437 = vsub.f32 %v432, %v436
        %v438 = vmul.f32 %v437, %v431
        %vm439 = vcmask 1047559
        %vm440 = vmand %vm413, %vm439
        %v441 = vsel %vm440, %v438, 0.0
        %v442 = vadd.f32 %v433, %v441
        %443 = vst [vmem:[%s105] sm:$0xff] %v442
        %s444 = scalar_lea.vmem %s97, 8 [#allocation0]
        %v445 = vld [vmem:[%s444] sm:$0xff]
        %s446 = scalar_lea.vmem %s105, 8 [#allocation1]
        %v447 = vld [vmem:[%s446] sm:$0xff]
        %v448 = vmul.f32 %v447, %v415
        %449 = vadd.xlane.f32.xlu0 %v448
        %v450 = vpop.xlane.xlu0 %449
        %v451 = vsub.f32 %v445, %v450
        %v452 = vmul.f32 %v451, %v431
        %v453 = vsel %vm413, %v452, 0.0
        %v454 = vadd.f32 %v447, %v453
        %s455 = scalar_lea.vmem %s105, 8 [#allocation1]
        %456 = vst [vmem:[%s455] sm:$0xff] %v454
        %vm457 = vcmask 72768
        %s458 = scalar_lea.vmem %s105, 8 [#allocation1]
        %v459 = vld [vmem:[%s458] ss:$0 sm:$0xff]
        %s460 = scalar_lea.vmem %s97, 8 [#allocation0]
        %v461 = vld [vmem:[%s460] ss:$0 sm:$0xff]
        %v462 = vmul.f32 %v459, %v459
        %463 = vadd.xlane.f32.xlu0 %v462
        %v464 = vpop.xlane.xlu0 %463
        %v465 = vsub.f32 %v461, %v464
        %v466 = vrsqrt.pop %v465
        %v467 = vmul.f32 %v466, %v465
        %v468 = vmul.f32 %v467, %v466
        %v469 = vmul.f32 0.5, %v468
        %v470 = vsub.f32 1.5, %v469
        %v471 = vmul.f32 %v466, %v470
        %vm472 = vweird.f32 %v465
        %vm473 = vweird.f32 %v466
        %vm474 = vmor %vm472, %vm473
        %v475 = vsel %vm474, %v466, %v471
        %s476 = scalar_lea.vmem %s97, 8 [#allocation0]
        %v477 = vld [vmem:[%s476] sm:$0xff]
        %s478 = scalar_lea.vmem %s105, 8 [#allocation1]
        %v479 = vld [vmem:[%s478] sm:$0xff]
        %v480 = vmul.f32 %v479, %v459
        %481 = vadd.xlane.f32.xlu0 %v480
        %v482 = vpop.xlane.xlu0 %481
        %v483 = vsub.f32 %v477, %v482
        %v484 = vmul.f32 %v483, %v475
        %v485 = vsel %vm457, %v484, 0.0
        %v486 = vadd.f32 %v479, %v485
        %s487 = scalar_lea.vmem %s105, 8 [#allocation1]
        %488 = vst [vmem:[%s487] sm:$0xff] %v486
        %vm489 = vcmask 80968
        %s490 = scalar_lea.vmem %s105, 9 [#allocation1]
        %v491 = vld [vmem:[%s490] ss:$0 sm:$0xff]
        %s492 = scalar_lea.vmem %s97, 9 [#allocation0]
        %v493 = vld [vmem:[%s492] ss:$0 sm:$0xff]
        %v494 = vmul.f32 %v491, %v491
        %495 = vadd.xlane.f32.xlu0 %v494
        %v496 = vpop.xlane.xlu0 %495
        %v497 = vsub.f32 %v493, %v496
        %v498 = vrsqrt.pop %v497
        %v499 = vmul.f32 %v498, %v497
        %v500 = vmul.f32 %v499, %v498
        %v501 = vmul.f32 0.5, %v500
        %v502 = vsub.f32 1.5, %v501
        %v503 = vmul.f32 %v498, %v502
        %vm504 = vweird.f32 %v497
        %vm505 = vweird.f32 %v498
        %vm506 = vmor %vm504, %vm505
        %v507 = vsel %vm506, %v498, %v503
        %s508 = scalar_lea.vmem %s97, 8 [#allocation0]
        %v509 = vld [vmem:[%s508] sm:$0xff]
        %s510 = scalar_lea.vmem %s105, 8 [#allocation1]
        %v511 = vld [vmem:[%s510] sm:$0xff]
        %v512 = vmul.f32 %v511, %v491
        %513 = vadd.xlane.f32.xlu0 %v512
        %v514 = vpop.xlane.xlu0 %513
        %v515 = vsub.f32 %v509, %v514
        %v516 = vmul.f32 %v515, %v507
        %vm517 = vcmask 1047553
        %vm518 = vmand %vm489, %vm517
        %v519 = vsel %vm518, %v516, 0.0
        %v520 = vadd.f32 %v511, %v519
        %s521 = scalar_lea.vmem %s105, 8 [#allocation1]
        %522 = vst [vmem:[%s521] sm:$0xff] %v520
        %vm523 = vcmask 89168
        %s524 = scalar_lea.vmem %s105, 10 [#allocation1]
        %v525 = vld [vmem:[%s524] ss:$0 sm:$0xff]
        %s526 = scalar_lea.vmem %s97, 10 [#allocation0]
        %v527 = vld [vmem:[%s526] ss:$0 sm:$0xff]
        %v528 = vmul.f32 %v525, %v525
        %529 = vadd.xlane.f32.xlu0 %v528
        %v530 = vpop.xlane.xlu0 %529
        %v531 = vsub.f32 %v527, %v530
        %v532 = vrsqrt.pop %v531
        %v533 = vmul.f32 %v532, %v531
        %v534 = vmul.f32 %v533, %v532
        %v535 = vmul.f32 0.5, %v534
        %v536 = vsub.f32 1.5, %v535
        %v537 = vmul.f32 %v532, %v536
        %vm538 = vweird.f32 %v531
        %vm539 = vweird.f32 %v532
        %vm540 = vmor %vm538, %vm539
        %v541 = vsel %vm540, %v532, %v537
        %s542 = scalar_lea.vmem %s97, 8 [#allocation0]
        %v543 = vld [vmem:[%s542] sm:$0xff]
        %s544 = scalar_lea.vmem %s105, 8 [#allocation1]
        %v545 = vld [vmem:[%s544] sm:$0xff]
        %v546 = vmul.f32 %v545, %v525
        %547 = vadd.xlane.f32.xlu0 %v546
        %v548 = vpop.xlane.xlu0 %547
        %v549 = vsub.f32 %v543, %v548
        %v550 = vmul.f32 %v549, %v541
        %vm551 = vcmask 1047554
        %vm552 = vmand %vm523, %vm551
        %v553 = vsel %vm552, %v550, 0.0
        %v554 = vadd.f32 %v545, %v553
        %s555 = scalar_lea.vmem %s105, 8 [#allocation1]
        %556 = vst [vmem:[%s555] sm:$0xff] %v554
        %vm557 = vcmask 97368
        %s558 = scalar_lea.vmem %s105, 11 [#allocation1]
        %v559 = vld [vmem:[%s558] ss:$0 sm:$0xff]
        %s560 = scalar_lea.vmem %s97, 11 [#allocation0]
        %v561 = vld [vmem:[%s560] ss:$0 sm:$0xff]
        %v562 = vmul.f32 %v559, %v559
        %563 = vadd.xlane.f32.xlu0 %v562
        %v564 = vpop.xlane.xlu0 %563
        %v565 = vsub.f32 %v561, %v564
        %v566 = vrsqrt.pop %v565
        %v567 = vmul.f32 %v566, %v565
        %v568 = vmul.f32 %v567, %v566
        %v569 = vmul.f32 0.5, %v568
        %v570 = vsub.f32 1.5, %v569
        %v571 = vmul.f32 %v566, %v570
        %vm572 = vweird.f32 %v565
        %vm573 = vweird.f32 %v566
        %vm574 = vmor %vm572, %vm573
        %v575 = vsel %vm574, %v566, %v571
        %s576 = scalar_lea.vmem %s97, 8 [#allocation0]
        %v577 = vld [vmem:[%s576] sm:$0xff]
        %s578 = scalar_lea.vmem %s105, 8 [#allocation1]
        %v579 = vld [vmem:[%s578] sm:$0xff]
        %v580 = vmul.f32 %v579, %v559
        %581 = vadd.xlane.f32.xlu0 %v580
        %v582 = vpop.xlane.xlu0 %581
        %v583 = vsub.f32 %v577, %v582
        %v584 = vmul.f32 %v583, %v575
        %vm585 = vcmask 1047555
        %vm586 = vmand %vm557, %vm585
        %v587 = vsel %vm586, %v584, 0.0
        %v588 = vadd.f32 %v579, %v587
        %s589 = scalar_lea.vmem %s105, 8 [#allocation1]
        %590 = vst [vmem:[%s589] sm:$0xff] %v588
        %vm591 = vcmask 105568
        %s592 = scalar_lea.vmem %s105, 12 [#allocation1]
        %v593 = vld [vmem:[%s592] ss:$0 sm:$0xff]
        %s594 = scalar_lea.vmem %s97, 12 [#allocation0]
        %v595 = vld [vmem:[%s594] ss:$0 sm:$0xff]
        %v596 = vmul.f32 %v593, %v593
        %597 = vadd.xlane.f32.xlu0 %v596
        %v598 = vpop.xlane.xlu0 %597
        %v599 = vsub.f32 %v595, %v598
        %v600 = vrsqrt.pop %v599
        %v601 = vmul.f32 %v600, %v599
        %v602 = vmul.f32 %v601, %v600
        %v603 = vmul.f32 0.5, %v602
        %v604 = vsub.f32 1.5, %v603
        %v605 = vmul.f32 %v600, %v604
        %vm606 = vweird.f32 %v599
        %vm607 = vweird.f32 %v600
        %vm608 = vmor %vm606, %vm607
        %v609 = vsel %vm608, %v600, %v605
        %s610 = scalar_lea.vmem %s97, 8 [#allocation0]
        %v611 = vld [vmem:[%s610] sm:$0xff]
        %s612 = scalar_lea.vmem %s105, 8 [#allocation1]
        %v613 = vld [vmem:[%s612] sm:$0xff]
        %v614 = vmul.f32 %v613, %v593
        %615 = vadd.xlane.f32.xlu0 %v614
        %v616 = vpop.xlane.xlu0 %615
        %v617 = vsub.f32 %v611, %v616
        %v618 = vmul.f32 %v617, %v609
        %vm619 = vcmask 1047556
        %vm620 = vmand %vm591, %vm619
        %v621 = vsel %vm620, %v618, 0.0
        %v622 = vadd.f32 %v613, %v621
        %s623 = scalar_lea.vmem %s105, 8 [#allocation1]
        %624 = vst [vmem:[%s623] sm:$0xff] %v622
        %vm625 = vcmask 113768
        %s626 = scalar_lea.vmem %s105, 13 [#allocation1]
        %v627 = vld [vmem:[%s626] ss:$0 sm:$0xff]
        %s628 = scalar_lea.vmem %s97, 13 [#allocation0]
        %v629 = vld [vmem:[%s628] ss:$0 sm:$0xff]
        %v630 = vmul.f32 %v627, %v627
        %631 = vadd.xlane.f32.xlu0 %v630
        %v632 = vpop.xlane.xlu0 %631
        %v633 = vsub.f32 %v629, %v632
        %v634 = vrsqrt.pop %v633
        %v635 = vmul.f32 %v634, %v633
        %v636 = vmul.f32 %v635, %v634
        %v637 = vmul.f32 0.5, %v636
        %v638 = vsub.f32 1.5, %v637
        %v639 = vmul.f32 %v634, %v638
        %vm640 = vweird.f32 %v633
        %vm641 = vweird.f32 %v634
        %vm642 = vmor %vm640, %vm641
        %v643 = vsel %vm642, %v634, %v639
        %s644 = scalar_lea.vmem %s97, 8 [#allocation0]
        %v645 = vld [vmem:[%s644] sm:$0xff]
        %s646 = scalar_lea.vmem %s105, 8 [#allocation1]
        %v647 = vld [vmem:[%s646] sm:$0xff]
        %v648 = vmul.f32 %v647, %v627
        %649 = vadd.xlane.f32.xlu0 %v648
        %v650 = vpop.xlane.xlu0 %649
        %v651 = vsub.f32 %v645, %v650
        %v652 = vmul.f32 %v651, %v643
        %vm653 = vcmask 1047557
        %vm654 = vmand %vm625, %vm653
        %v655 = vsel %vm654, %v652, 0.0
        %v656 = vadd.f32 %v647, %v655
        %s657 = scalar_lea.vmem %s105, 8 [#allocation1]
        %658 = vst [vmem:[%s657] sm:$0xff] %v656
        %vm659 = vcmask 121968
        %s660 = scalar_lea.vmem %s105, 14 [#allocation1]
        %v661 = vld [vmem:[%s660] ss:$0 sm:$0xff]
        %s662 = scalar_lea.vmem %s97, 14 [#allocation0]
        %v663 = vld [vmem:[%s662] ss:$0 sm:$0xff]
        %v664 = vmul.f32 %v661, %v661
        %665 = vadd.xlane.f32.xlu0 %v664
        %v666 = vpop.xlane.xlu0 %665
        %v667 = vsub.f32 %v663, %v666
        %v668 = vrsqrt.pop %v667
        %v669 = vmul.f32 %v668, %v667
        %v670 = vmul.f32 %v669, %v668
        %v671 = vmul.f32 0.5, %v670
        %v672 = vsub.f32 1.5, %v671
        %v673 = vmul.f32 %v668, %v672
        %vm674 = vweird.f32 %v667
        %vm675 = vweird.f32 %v668
        %vm676 = vmor %vm674, %vm675
        %v677 = vsel %vm676, %v668, %v673
        %s678 = scalar_lea.vmem %s97, 8 [#allocation0]
        %v679 = vld [vmem:[%s678] sm:$0xff]
        %s680 = scalar_lea.vmem %s105, 8 [#allocation1]
        %v681 = vld [vmem:[%s680] sm:$0xff]
        %v682 = vmul.f32 %v681, %v661
        %683 = vadd.xlane.f32.xlu0 %v682
        %v684 = vpop.xlane.xlu0 %683
        %v685 = vsub.f32 %v679, %v684
        %v686 = vmul.f32 %v685, %v677
        %vm687 = vcmask 1047558
        %vm688 = vmand %vm659, %vm687
        %v689 = vsel %vm688, %v686, 0.0
        %v690 = vadd.f32 %v681, %v689
        %s691 = scalar_lea.vmem %s105, 8 [#allocation1]
        %692 = vst [vmem:[%s691] sm:$0xff] %v690
        %vm693 = vcmask 130168
        %s694 = scalar_lea.vmem %s105, 15 [#allocation1]
        %v695 = vld [vmem:[%s694] ss:$0 sm:$0xff]
        %s696 = scalar_lea.vmem %s97, 15 [#allocation0]
        %v697 = vld [vmem:[%s696] ss:$0 sm:$0xff]
        %v698 = vmul.f32 %v695, %v695
        %699 = vadd.xlane.f32.xlu0 %v698
        %v700 = vpop.xlane.xlu0 %699
        %v701 = vsub.f32 %v697, %v700
        %v702 = vrsqrt.pop %v701
        %v703 = vmul.f32 %v702, %v701
        %v704 = vmul.f32 %v703, %v702
        %v705 = vmul.f32 0.5, %v704
        %v706 = vsub.f32 1.5, %v705
        %v707 = vmul.f32 %v702, %v706
        %vm708 = vweird.f32 %v701
        %vm709 = vweird.f32 %v702
        %vm710 = vmor %vm708, %vm709
        %v711 = vsel %vm710, %v702, %v707
        %s712 = scalar_lea.vmem %s97, 8 [#allocation0]
        %v713 = vld [vmem:[%s712] sm:$0xff]
        %s714 = scalar_lea.vmem %s105, 8 [#allocation1]
        %v715 = vld [vmem:[%s714] sm:$0xff]
        %v716 = vmul.f32 %v715, %v695
        %717 = vadd.xlane.f32.xlu0 %v716
        %v718 = vpop.xlane.xlu0 %717
        %v719 = vsub.f32 %v713, %v718
        %v720 = vmul.f32 %v719, %v711
        %vm721 = vcmask 1047559
        %vm722 = vmand %vm693, %vm721
        %v723 = vsel %vm722, %v720, 0.0
        %v724 = vadd.f32 %v715, %v723
        %s725 = scalar_lea.vmem %s105, 8 [#allocation1]
        %726 = vst [vmem:[%s725] sm:$0xff] %v724
        %s727 = sand.u32 %s8, 1
        %s728 = sand.u32 %s8, 1
        %s729 = smul.addr %s728, 16
        %s730 = scalar_lea.vmem [#allocation1], %s729
        %s731 = sadd.s32 %s15, %s14
        %s732 = smul.addr %s13, 2
        %s733 = sadd.s32 %s731, %s732
        %s734 = smul.addr %s733, 8
        %s735 = scalar_lea.vmem %s1, %s734
        // Predicated region
        $region55: #{custom-call.8} parent=53 // pred_check
          _
        $region56: #{custom-call.8} parent=53 // pred_check_branch
          %737 = sbr.rel (0) target = $region58
        $region57: #{custom-call.8} parent=53 // pred_region
          // Predicated region
          $region59: #{custom-call.8} parent=57 // pred_check
            _
          $region60: #{custom-call.8} parent=57 // pred_check_branch
            %739 = sbr.rel (0) target = $region62
          $region61: #{custom-call.8} parent=57 // pred_region
            // Predicated region
            $region74: #{custom-call.8} parent=61 // pred_check
              _
            $region75: #{custom-call.8} parent=61 // pred_check_branch
              %757 = sbr.rel (0) target = $region77
            $region76: #{custom-call.8} parent=61 // pred_region
              loop: start=0, step=1, limit=1
              $region78: #{custom-call.8} parent=76 // loop_pre_header
                _
              $region79: #{custom-call.8} parent=76 // loop_header
                %s759 = sphi 0, %s763
                %p760 = scmp.ge.s32.totalorder %s759, 1
                %s764 = sphi %s730, %s730
                %s765 = sphi %s735, %s735
              $region80: #{custom-call.8} parent=76 // loop_header_branch
                %762 = sbr.rel (%p760) target = $region84
              $region81: #{custom-call.8} parent=76 // loop_body
                %v766 = vld [vmem:[%s764] sm:$0xff]
                %767 = vst [vmem:[%s765] sm:$0xff] %v766
                %v768 = vld [vmem:[%s764 + $0x8] sm:$0xff]
                %769 = vst [vmem:[%s765 + $0x8] sm:$0xff] %v768
              $region82: #{custom-call.8} parent=76 // loop_footer
                %s763 = sadd.s32 1, %s759
              $region83: #{custom-call.8} parent=76 // loop_footer_branch
                %758 = sbr.rel target = $region79
              $region84: #{custom-call.8} parent=76 // loop_exit
                _
            $region77: #{custom-call.8} parent=61 // pred_fallthru
              _
            // Predicated region
            $region85: #{custom-call.8} parent=61 // pred_check
              _
            $region86: #{custom-call.8} parent=61 // pred_check_branch
              %771 = sbr.rel target = $region88
            $region87: #{custom-call.8} parent=61 // pred_region
              _
            $region88: #{custom-call.8} parent=61 // pred_fallthru
              _
          $region62: #{custom-call.8} parent=57 // pred_fallthru
            _
          // Predicated region
          $region63: #{custom-call.8} parent=57 // pred_check
            _
          $region64: #{custom-call.8} parent=57 // pred_check_branch
            %741 = sbr.rel target = $region66
          $region65: #{custom-call.8} parent=57 // pred_region
            %s743 = ssub.s32 256, 1
            loop: start=0, step=1, limit=1
            $region67: #{custom-call.8} parent=65 // loop_pre_header
              _
            $region68: #{custom-call.8} parent=65 // loop_header
              %s745 = sphi 0, %s749
              %p746 = scmp.ge.s32.totalorder %s745, 1
              %s750 = sphi %s730, %s730
              %s751 = sphi %s735, %s735
            $region69: #{custom-call.8} parent=65 // loop_header_branch
              %748 = sbr.rel (%p746) target = $region73
            $region70: #{custom-call.8} parent=65 // loop_body
              %v752 = vld [vmem:[%s750] sm:%s743]
              %753 = vst [vmem:[%s751] sm:%s743] %v752
              %v754 = vld [vmem:[%s750 + $0x8] sm:%s743]
              %755 = vst [vmem:[%s751 + $0x8] sm:%s743] %v754
            $region71: #{custom-call.8} parent=65 // loop_footer
              %s749 = sadd.s32 1, %s745
            $region72: #{custom-call.8} parent=65 // loop_footer_branch
              %744 = sbr.rel target = $region68
            $region73: #{custom-call.8} parent=65 // loop_exit
              _
          $region66: #{custom-call.8} parent=57 // pred_fallthru
            _
        $region58: #{custom-call.8} parent=53 // pred_fallthru
          _
        %772 = vnop
      $region54: #{custom-call.8} parent=5 // pred_fallthru
        _
      %p773 = scmp.le.s32.totalorder 2, %s3
      // Predicated region
      $region89: #{custom-call.8} parent=5 // pred_check
        %p774 = pneg %p773
      $region90: #{custom-call.8} parent=5 // pred_check_branch
        %776 = sbr.rel (%p774) target = $region92
      $region91: #{custom-call.8} parent=5 // pred_region
        %s777 = ssub.s32 %s3, 2
        %s778 = sand.u32 %s9, 1
        %s779 = sand.u32 %s9, 1
        %s780 = smul.addr %s779, 16
        %s781 = scalar_lea.vmem [#allocation1], %s780
      $region92: #{custom-call.8} parent=5 // pred_fallthru
        _
    $region6: #{custom-call.8} parent=1 // loop_footer
      %s7 = sadd.s32 1, %s3
    $region7: #{custom-call.8} parent=1 // loop_footer_branch
      %2 = sbr.rel target = $region3
    $region8: #{custom-call.8} parent=1 // loop_exit
      _

// kernel: _lambda_.1
$region0: #{_lambda_.1}
  #allocation0 [shape = 'u32[]', space=smem, size = 0x4, offset = 0x4, fixed_abs, tag = 'smem constant byte address 0x4 - core index']
  #allocation1 [shape = 'u32[72,128]{1,0:T(1,128)}', space=vmem, size = 0x9000, scoped, tag = 'internal scratch']
  %s0 = inlined_call_operand.vmem [shape: f32[8,8,128], index: 0, kind: input, shape index: {}]
  %s1 = inlined_call_operand.vmem [shape: f32[8,8], index: 1, kind: input, shape index: {}]
  %s2 = inlined_call_operand.vmem [shape: f32[8,1], index: 2, kind: input, shape index: {}]
  %s3 = inlined_call_operand.vmem [shape: f32[2,8,6], index: 3, kind: input, shape index: {}]
  %s4 = inlined_call_operand.vmem [shape: f32[1,16,128], index: 4, kind: output, shape index: {}]
  %s5 = sld [smem:[#allocation0]]
  $region26: #{_lambda_.1} parent=0
    _
  %s7 = ssub.s32 1, %s5
  %s8 = scalar_select 0, %s7, %s5
  // Predicated region
  $region2: #{_lambda_.1} parent=0 // pred_check
    _
  $region3: #{_lambda_.1} parent=0 // pred_check_branch
    %10 = sbr.rel (0) target = $region5
  $region4: #{_lambda_.1} parent=0 // pred_region
    _
  $region5: #{_lambda_.1} parent=0 // pred_fallthru
    _
  // Predicated region
  $region6: #{_lambda_.1} parent=0 // pred_check
    _
  $region7: #{_lambda_.1} parent=0 // pred_check_branch
    %12 = sbr.rel (0) target = $region9
  $region8: #{_lambda_.1} parent=0 // pred_region
    _
  $region9: #{_lambda_.1} parent=0 // pred_fallthru
    _
  // Predicated region
  $region10: #{_lambda_.1} parent=0 // pred_check
    _
  $region11: #{_lambda_.1} parent=0 // pred_check_branch
    %14 = sbr.rel (0) target = $region13
  $region12: #{_lambda_.1} parent=0 // pred_region
    _
  $region13: #{_lambda_.1} parent=0 // pred_fallthru
    _
  // Predicated region
  $region14: #{_lambda_.1} parent=0 // pred_check
    _
  $region15: #{_lambda_.1} parent=0 // pred_check_branch
    %16 = sbr.rel (0) target = $region17
  $region16: #{_lambda_.1} parent=0 // pred_region
    _
  $region17: #{_lambda_.1} parent=0 // pred_fallthru
    _
  %v18 = vld [vmem:[%s0] sm:$0xff]
  %v19 = vld [vmem:[%s0 + $0x8] sm:$0xff]
  %v20 = vld [vmem:[%s0 + $0x10] sm:$0xff]
  %v21 = vld [vmem:[%s0 + $0x18] sm:$0xff]
  %v22 = vld [vmem:[%s0 + $0x20] sm:$0xff]
  %v23 = vld [vmem:[%s0 + $0x28] sm:$0xff]
  %v24 = vld [vmem:[%s0 + $0x30] sm:$0xff]
  %v25 = vld [vmem:[%s0 + $0x38] sm:$0xff]
  %v26 = vpack.c.bf16 %v18, %v18
  %v27 = vpack.c.bf16 %v19, %v19
  %v28 = vpack.c.bf16 %v20, %v20
  %v29 = vpack.c.bf16 %v21, %v21
  %v30 = vpack.c.bf16 %v22, %v22
  %v31 = vpack.c.bf16 %v23, %v23
  %v32 = vpack.c.bf16 %v24, %v24
  %v33 = vpack.c.bf16 %v25, %v25
  %v34 = vld [vmem:[%s1] sm:$0xff]
  %v35 = vpack.c.bf16 %v34, %v34
  %v36 = vld [vmem:[%s2] sm:$0xff]
  %38 = vset.pattern.permute.xlu0 0
  %39 = vperm.xlu0 %38, %v36
  %v40 = vpop.permute.xlu0 %39
  %vm42 = vcmask 64512
  %v44 = vsel %vm42, %v35, 0
  %vm46 = vcmask 1043456
  %v48 = vsel %vm46, %v26, 0
  %50 = vmatpush.bf16.msra.mxu0 0
  %51 = vmatpush.bf16.msra.mxu0 0
  %52 = vmatpush.bf16.msra.mxu0 0
  %53 = vmatpush.bf16.msra.mxu0 0
  %54 = vmatpush.bf16.msra.mxu0 0
  %55 = vmatpush.bf16.msra.mxu0 0
  %56 = vmatpush.bf16.msra.mxu0 0
  %57 = vmatpush.bf16.msra.mxu0 %v48
  %58 = vmatmul.bf16.gmra.mxu0 %v44
  %v59 = vpop.f32.mrf.mxu0
  %v60 = vadd.f32 %v40, %v59
  %v61 = vpop.f32.mrf.mxu0
  %62 = vdwg.mxu0
  %v64 = vsel %vm46, %v27, 0
  %66 = vmatpush.bf16.msra.mxu0 0
  %67 = vmatpush.bf16.msra.mxu0 0
  %68 = vmatpush.bf16.msra.mxu0 0
  %69 = vmatpush.bf16.msra.mxu0 0
  %70 = vmatpush.bf16.msra.mxu0 0
  %71 = vmatpush.bf16.msra.mxu0 0
  %72 = vmatpush.bf16.msra.mxu0 0
  %73 = vmatpush.bf16.msra.mxu0 %v64
  %74 = vmatmul.bf16.gmra.mxu0 %v44
  %v75 = vpop.f32.mrf.mxu0
  %v76 = vadd.f32 %v40, %v75
  %v77 = vpop.f32.mrf.mxu0
  %78 = vdwg.mxu0
  %v80 = vsel %vm46, %v28, 0
  %82 = vmatpush.bf16.msra.mxu0 0
  %83 = vmatpush.bf16.msra.mxu0 0
  %84 = vmatpush.bf16.msra.mxu0 0
  %85 = vmatpush.bf16.msra.mxu0 0
  %86 = vmatpush.bf16.msra.mxu0 0
  %87 = vmatpush.bf16.msra.mxu0 0
  %88 = vmatpush.bf16.msra.mxu0 0
  %89 = vmatpush.bf16.msra.mxu0 %v80
  %90 = vmatmul.bf16.gmra.mxu0 %v44
  %v91 = vpop.f32.mrf.mxu0
  %v92 = vadd.f32 %v40, %v91
  %v93 = vpop.f32.mrf.mxu0
  %94 = vdwg.mxu0
  %v96 = vsel %vm46, %v29, 0
  %98 = vmatpush.bf16.msra.mxu0 0
  %99 = vmatpush.bf16.msra.mxu0 0
  %100 = vmatpush.bf16.msra.mxu0 0
  %101 = vmatpush.bf16.msra.mxu0 0
  %102 = vmatpush.bf16.msra.mxu0 0
  %103 = vmatpush.bf16.msra.mxu0 0
  %104 = vmatpush.bf16.msra.mxu0 0
  %105 = vmatpush.bf16.msra.mxu0 %v96
  %106 = vmatmul.bf16.gmra.mxu0 %v44
  %v107 = vpop.f32.mrf.mxu0
  %v108 = vadd.f32 %v40, %v107
  %v109 = vpop.f32.mrf.mxu0
  %110 = vdwg.mxu0
  %v112 = vsel %vm46, %v30, 0
  %114 = vmatpush.bf16.msra.mxu0 0
  %115 = vmatpush.bf16.msra.mxu0 0
  %116 = vmatpush.bf16.msra.mxu0 0
  %117 = vmatpush.bf16.msra.mxu0 0
  %118 = vmatpush.bf16.msra.mxu0 0
  %119 = vmatpush.bf16.msra.mxu0 0
  %120 = vmatpush.bf16.msra.mxu0 0
  %121 = vmatpush.bf16.msra.mxu0 %v112
  %122 = vmatmul.bf16.gmra.mxu0 %v44
  %v123 = vpop.f32.mrf.mxu0
  %v124 = vadd.f32 %v40, %v123
  %v125 = vpop.f32.mrf.mxu0
  %126 = vdwg.mxu0
  %v128 = vsel %vm46, %v31, 0
  %130 = vmatpush.bf16.msra.mxu0 0
  %131 = vmatpush.bf16.msra.mxu0 0
  %132 = vmatpush.bf16.msra.mxu0 0
  %133 = vmatpush.bf16.msra.mxu0 0
  %134 = vmatpush.bf16.msra.mxu0 0
  %135 = vmatpush.bf16.msra.mxu0 0
  %136 = vmatpush.bf16.msra.mxu0 0
  %137 = vmatpush.bf16.msra.mxu0 %v128
  %138 = vmatmul.bf16.gmra.mxu0 %v44
  %v139 = vpop.f32.mrf.mxu0
  %v140 = vadd.f32 %v40, %v139
  %v141 = vpop.f32.mrf.mxu0
  %142 = vdwg.mxu0
  %v144 = vsel %vm46, %v32, 0
  %146 = vmatpush.bf16.msra.mxu0 0
  %147 = vmatpush.bf16.msra.mxu0 0
  %148 = vmatpush.bf16.msra.mxu0 0
  %149 = vmatpush.bf16.msra.mxu0 0
  %150 = vmatpush.bf16.msra.mxu0 0
  %151 = vmatpush.bf16.msra.mxu0 0
  %152 = vmatpush.bf16.msra.mxu0 0
  %153 = vmatpush.bf16.msra.mxu0 %v144
  %154 = vmatmul.bf16.gmra.mxu0 %v44
  %v155 = vpop.f32.mrf.mxu0
  %v156 = vadd.f32 %v40, %v155
  %v157 = vpop.f32.mrf.mxu0
  %158 = vdwg.mxu0
  %v160 = vsel %vm46, %v33, 0
  %162 = vmatpush.bf16.msra.mxu0 0
  %163 = vmatpush.bf16.msra.mxu0 0
  %164 = vmatpush.bf16.msra.mxu0 0
  %165 = vmatpush.bf16.msra.mxu0 0
  %166 = vmatpush.bf16.msra.mxu0 0
  %167 = vmatpush.bf16.msra.mxu0 0
  %168 = vmatpush.bf16.msra.mxu0 0
  %169 = vmatpush.bf16.msra.mxu0 %v160
  %170 = vmatmul.bf16.gmra.mxu0 %v44
  %v171 = vpop.f32.mrf.mxu0
  %v172 = vadd.f32 %v40, %v171
  %v173 = vpop.f32.mrf.mxu0
  %174 = vdwg.mxu0
  %v175 = vlaneseq
  %v176 = vand.u32 %v175, 127
  %v177 = vld [vmem:[%s3] sm:$0xff]
  %v178 = vld [vmem:[%s3 + $0x8] sm:$0xff]
  %179 = vrot.lane.b32.xlu0 %v60, 2
  %v180 = vpop.permute.xlu0 %179
  %181 = vrot.lane.b32.xlu0 %v76, 2
  %v182 = vpop.permute.xlu0 %181
  %183 = vrot.lane.b32.xlu0 %v92, 2
  %v184 = vpop.permute.xlu0 %183
  %185 = vrot.lane.b32.xlu0 %v108, 2
  %v186 = vpop.permute.xlu0 %185
  %187 = vrot.lane.b32.xlu0 %v124, 2
  %v188 = vpop.permute.xlu0 %187
  %189 = vrot.lane.b32.xlu0 %v140, 2
  %v190 = vpop.permute.xlu0 %189
  %191 = vrot.lane.b32.xlu0 %v156, 2
  %v192 = vpop.permute.xlu0 %191
  %193 = vrot.lane.b32.xlu0 %v172, 2
  %v194 = vpop.permute.xlu0 %193
  %vm195 = vcmp.ge.s32.totalorder %v176, 2
  %v196 = vsel %vm195, 1, 0
  %vm197 = vcmp.eq.s32.totalorder %v196, 1
  %v198 = vsel %vm197, %v180, 0.0
  %v199 = vsel %vm197, %v182, 0.0
  %v200 = vsel %vm197, %v184, 0.0
  %v201 = vsel %vm197, %v186, 0.0
  %v202 = vsel %vm197, %v188, 0.0
  %v203 = vsel %vm197, %v190, 0.0
  %v204 = vsel %vm197, %v192, 0.0
  %v205 = vsel %vm197, %v194, 0.0
  %207 = vset.pattern.permute.xlu0 0
  %208 = vperm.xlu0 %207, %v177
  %v209 = vpop.permute.xlu0 %208
  %v211 = vmul.f32 %v209, %v198
  %v212 = vmul.f32 %v209, %v199
  %v213 = vmul.f32 %v209, %v200
  %v214 = vmul.f32 %v209, %v201
  %v215 = vmul.f32 %v209, %v202
  %v216 = vmul.f32 %v209, %v203
  %v217 = vmul.f32 %v209, %v204
  %v218 = vmul.f32 %v209, %v205
  %v219 = vadd.f32 %v211, 0.0
  %v220 = vadd.f32 %v212, 0.0
  %v221 = vadd.f32 %v213, 0.0
  %v222 = vadd.f32 %v214, 0.0
  %v223 = vadd.f32 %v215, 0.0
  %v224 = vadd.f32 %v216, 0.0
  %v225 = vadd.f32 %v217, 0.0
  %v226 = vadd.f32 %v218, 0.0
  %228 = vset.pattern.permute.xlu0 0
  %229 = vperm.xlu0 %228, %v178
  %v230 = vpop.permute.xlu0 %229
  %v232 = vmul.f32 %v230, %v198
  %v233 = vmul.f32 %v230, %v199
  %v234 = vmul.f32 %v230, %v200
  %v235 = vmul.f32 %v230, %v201
  %v236 = vmul.f32 %v230, %v202
  %v237 = vmul.f32 %v230, %v203
  %v238 = vmul.f32 %v230, %v204
  %v239 = vmul.f32 %v230, %v205
  %v240 = vadd.f32 %v232, 0.0
  %v241 = vadd.f32 %v233, 0.0
  %v242 = vadd.f32 %v234, 0.0
  %v243 = vadd.f32 %v235, 0.0
  %v244 = vadd.f32 %v236, 0.0
  %v245 = vadd.f32 %v237, 0.0
  %v246 = vadd.f32 %v238, 0.0
  %v247 = vadd.f32 %v239, 0.0
  %248 = vrot.lane.b32.xlu0 %v60, 1
  %v249 = vpop.permute.xlu0 %248
  %250 = vrot.lane.b32.xlu0 %v76, 1
  %v251 = vpop.permute.xlu0 %250
  %252 = vrot.lane.b32.xlu0 %v92, 1
  %v253 = vpop.permute.xlu0 %252
  %254 = vrot.lane.b32.xlu0 %v108, 1
  %v255 = vpop.permute.xlu0 %254
  %256 = vrot.lane.b32.xlu0 %v124, 1
  %v257 = vpop.permute.xlu0 %256
  %258 = vrot.lane.b32.xlu0 %v140, 1
  %v259 = vpop.permute.xlu0 %258
  %260 = vrot.lane.b32.xlu0 %v156, 1
  %v261 = vpop.permute.xlu0 %260
  %262 = vrot.lane.b32.xlu0 %v172, 1
  %v263 = vpop.permute.xlu0 %262
  %vm264 = vcmp.ge.s32.totalorder %v176, 1
  %v265 = vsel %vm264, 1, 0
  %vm266 = vcmp.eq.s32.totalorder %v265, 1
  %v267 = vsel %vm266, %v249, 0.0
  %v268 = vsel %vm266, %v251, 0.0
  %v269 = vsel %vm266, %v253, 0.0
  %v270 = vsel %vm266, %v255, 0.0
  %v271 = vsel %vm266, %v257, 0.0
  %v272 = vsel %vm266, %v259, 0.0
  %v273 = vsel %vm266, %v261, 0.0
  %v274 = vsel %vm266, %v263, 0.0
  %275 = vset.pattern.permute.xlu0 1
  %276 = vperm.xlu0 %275, %v177
  %v277 = vpop.permute.xlu0 %276
  %v279 = vmul.f32 %v277, %v267
  %v280 = vmul.f32 %v277, %v268
  %v281 = vmul.f32 %v277, %v269
  %v282 = vmul.f32 %v277, %v270
  %v283 = vmul.f32 %v277, %v271
  %v284 = vmul.f32 %v277, %v272
  %v285 = vmul.f32 %v277, %v273
  %v286 = vmul.f32 %v277, %v274
  %v287 = vadd.f32 %v219, %v279
  %v288 = vadd.f32 %v220, %v280
  %v289 = vadd.f32 %v221, %v281
  %v290 = vadd.f32 %v222, %v282
  %v291 = vadd.f32 %v223, %v283
  %v292 = vadd.f32 %v224, %v284
  %v293 = vadd.f32 %v225, %v285
  %v294 = vadd.f32 %v226, %v286
  %295 = vset.pattern.permute.xlu0 1
  %296 = vperm.xlu0 %295, %v178
  %v297 = vpop.permute.xlu0 %296
  %v299 = vmul.f32 %v297, %v267
  %v300 = vmul.f32 %v297, %v268
  %v301 = vmul.f32 %v297, %v269
  %v302 = vmul.f32 %v297, %v270
  %v303 = vmul.f32 %v297, %v271
  %v304 = vmul.f32 %v297, %v272
  %v305 = vmul.f32 %v297, %v273
  %v306 = vmul.f32 %v297, %v274
  %v307 = vadd.f32 %v240, %v299
  %v308 = vadd.f32 %v241, %v300
  %v309 = vadd.f32 %v242, %v301
  %v310 = vadd.f32 %v243, %v302
  %v311 = vadd.f32 %v244, %v303
  %v312 = vadd.f32 %v245, %v304
  %v313 = vadd.f32 %v246, %v305
  %v314 = vadd.f32 %v247, %v306
  %315 = vset.pattern.permute.xlu0 2
  %316 = vperm.xlu0 %315, %v177
  %v317 = vpop.permute.xlu0 %316
  %v319 = vmul.f32 %v317, %v60
  %v320 = vmul.f32 %v317, %v76
  %v321 = vmul.f32 %v317, %v92
  %v322 = vmul.f32 %v317, %v108
  %v323 = vmul.f32 %v317, %v124
  %v324 = vmul.f32 %v317, %v140
  %v325 = vmul.f32 %v317, %v156
  %v326 = vmul.f32 %v317, %v172
  %v327 = vadd.f32 %v287, %v319
  %v328 = vadd.f32 %v288, %v320
  %v329 = vadd.f32 %v289, %v321
  %v330 = vadd.f32 %v290, %v322
  %v331 = vadd.f32 %v291, %v323
  %v332 = vadd.f32 %v292, %v324
  %v333 = vadd.f32 %v293, %v325
  %v334 = vadd.f32 %v294, %v326
  %335 = vset.pattern.permute.xlu0 2
  %336 = vperm.xlu0 %335, %v178
  %v337 = vpop.permute.xlu0 %336
  %v339 = vmul.f32 %v337, %v60
  %v340 = vmul.f32 %v337, %v76
  %v341 = vmul.f32 %v337, %v92
  %v342 = vmul.f32 %v337, %v108
  %v343 = vmul.f32 %v337, %v124
  %v344 = vmul.f32 %v337, %v140
  %v345 = vmul.f32 %v337, %v156
  %v346 = vmul.f32 %v337, %v172
  %v347 = vadd.f32 %v307, %v339
  %v348 = vadd.f32 %v308, %v340
  %v349 = vadd.f32 %v309, %v341
  %v350 = vadd.f32 %v310, %v342
  %v351 = vadd.f32 %v311, %v343
  %v352 = vadd.f32 %v312, %v344
  %v353 = vadd.f32 %v313, %v345
  %v354 = vadd.f32 %v314, %v346
  %355 = vrot.lane.b32.xlu0 %v60, 127
  %v356 = vpop.permute.xlu0 %355
  %357 = vrot.lane.b32.xlu0 %v76, 127
  %v358 = vpop.permute.xlu0 %357
  %359 = vrot.lane.b32.xlu0 %v92, 127
  %v360 = vpop.permute.xlu0 %359
  %361 = vrot.lane.b32.xlu0 %v108, 127
  %v362 = vpop.permute.xlu0 %361
  %363 = vrot.lane.b32.xlu0 %v124, 127
  %v364 = vpop.permute.xlu0 %363
  %365 = vrot.lane.b32.xlu0 %v140, 127
  %v366 = vpop.permute.xlu0 %365
  %367 = vrot.lane.b32.xlu0 %v156, 127
  %v368 = vpop.permute.xlu0 %367
  %369 = vrot.lane.b32.xlu0 %v172, 127
  %v370 = vpop.permute.xlu0 %369
  %vm371 = vcmp.lt.s32.totalorder %v176, 127
  %v372 = vsel %vm371, 1, 0
  %vm373 = vcmp.eq.s32.totalorder %v372, 1
  %v374 = vsel %vm373, %v356, 0.0
  %v375 = vsel %vm373, %v358, 0.0
  %v376 = vsel %vm373, %v360, 0.0
  %v377 = vsel %vm373, %v362, 0.0
  %v378 = vsel %vm373, %v364, 0.0
  %v379 = vsel %vm373, %v366, 0.0
  %v380 = vsel %vm373, %v368, 0.0
  %v381 = vsel %vm373, %v370, 0.0
  %382 = vset.pattern.permute.xlu0 3
  %383 = vperm.xlu0 %382, %v177
  %v384 = vpop.permute.xlu0 %383
  %v386 = vmul.f32 %v384, %v374
  %v387 = vmul.f32 %v384, %v375
  %v388 = vmul.f32 %v384, %v376
  %v389 = vmul.f32 %v384, %v377
  %v390 = vmul.f32 %v384, %v378
  %v391 = vmul.f32 %v384, %v379
  %v392 = vmul.f32 %v384, %v380
  %v393 = vmul.f32 %v384, %v381
  %v394 = vadd.f32 %v327, %v386
  %v395 = vadd.f32 %v328, %v387
  %v396 = vadd.f32 %v329, %v388
  %v397 = vadd.f32 %v330, %v389
  %v398 = vadd.f32 %v331, %v390
  %v399 = vadd.f32 %v332, %v391
  %v400 = vadd.f32 %v333, %v392
  %v401 = vadd.f32 %v334, %v393
  %402 = vset.pattern.permute.xlu0 3
  %403 = vperm.xlu0 %402, %v178
  %v404 = vpop.permute.xlu0 %403
  %v406 = vmul.f32 %v404, %v374
  %v407 = vmul.f32 %v404, %v375
  %v408 = vmul.f32 %v404, %v376
  %v409 = vmul.f32 %v404, %v377
  %v410 = vmul.f32 %v404, %v378
  %v411 = vmul.f32 %v404, %v379
  %v412 = vmul.f32 %v404, %v380
  %v413 = vmul.f32 %v404, %v381
  %v414 = vadd.f32 %v347, %v406
  %v415 = vadd.f32 %v348, %v407
  %v416 = vadd.f32 %v349, %v408
  %v417 = vadd.f32 %v350, %v409
  %v418 = vadd.f32 %v351, %v410
  %v419 = vadd.f32 %v352, %v411
  %v420 = vadd.f32 %v353, %v412
  %v421 = vadd.f32 %v354, %v413
  %422 = vrot.lane.b32.xlu0 %v60, 126
  %v423 = vpop.permute.xlu0 %422
  %424 = vrot.lane.b32.xlu0 %v76, 126
  %v425 = vpop.permute.xlu0 %424
  %426 = vrot.lane.b32.xlu0 %v92, 126
  %v427 = vpop.permute.xlu0 %426
  %428 = vrot.lane.b32.xlu0 %v108, 126
  %v429 = vpop.permute.xlu0 %428
  %430 = vrot.lane.b32.xlu0 %v124, 126
  %v431 = vpop.permute.xlu0 %430
  %432 = vrot.lane.b32.xlu0 %v140, 126
  %v433 = vpop.permute.xlu0 %432
  %434 = vrot.lane.b32.xlu0 %v156, 126
  %v435 = vpop.permute.xlu0 %434
  %436 = vrot.lane.b32.xlu0 %v172, 126
  %v437 = vpop.permute.xlu0 %436
  %vm438 = vcmp.lt.s32.totalorder %v176, 126
  %v439 = vsel %vm438, 1, 0
  %vm440 = vcmp.eq.s32.totalorder %v439, 1
  %v441 = vsel %vm440, %v423, 0.0
  %v442 = vsel %vm440, %v425, 0.0
  %v443 = vsel %vm440, %v427, 0.0
  %v444 = vsel %vm440, %v429, 0.0
  %v445 = vsel %vm440, %v431, 0.0
  %v446 = vsel %vm440, %v433, 0.0
  %v447 = vsel %vm440, %v435, 0.0
  %v448 = vsel %vm440, %v437, 0.0
  %449 = vset.pattern.permute.xlu0 4
  %450 = vperm.xlu0 %449, %v177
  %v451 = vpop.permute.xlu0 %450
  %v453 = vmul.f32 %v451, %v441
  %v454 = vmul.f32 %v451, %v442
  %v455 = vmul.f32 %v451, %v443
  %v456 = vmul.f32 %v451, %v444
  %v457 = vmul.f32 %v451, %v445
  %v458 = vmul.f32 %v451, %v446
  %v459 = vmul.f32 %v451, %v447
  %v460 = vmul.f32 %v451, %v448
  %v461 = vadd.f32 %v394, %v453
  %v462 = vadd.f32 %v395, %v454
  %v463 = vadd.f32 %v396, %v455
  %v464 = vadd.f32 %v397, %v456
  %v465 = vadd.f32 %v398, %v457
  %v466 = vadd.f32 %v399, %v458
  %v467 = vadd.f32 %v400, %v459
  %v468 = vadd.f32 %v401, %v460
  %469 = vset.pattern.permute.xlu0 4
  %470 = vperm.xlu0 %469, %v178
  %v471 = vpop.permute.xlu0 %470
  %v473 = vmul.f32 %v471, %v441
  %v474 = vmul.f32 %v471, %v442
  %v475 = vmul.f32 %v471, %v443
  %v476 = vmul.f32 %v471, %v444
  %v477 = vmul.f32 %v471, %v445
  %v478 = vmul.f32 %v471, %v446
  %v479 = vmul.f32 %v471, %v447
  %v480 = vmul.f32 %v471, %v448
  %v481 = vadd.f32 %v414, %v473
  %v482 = vadd.f32 %v415, %v474
  %v483 = vadd.f32 %v416, %v475
  %v484 = vadd.f32 %v417, %v476
  %v485 = vadd.f32 %v418, %v477
  %v486 = vadd.f32 %v419, %v478
  %v487 = vadd.f32 %v420, %v479
  %v488 = vadd.f32 %v421, %v480
  %489 = vset.pattern.permute.xlu0 5
  %490 = vperm.xlu0 %489, %v177
  %v491 = vpop.permute.xlu0 %490
  %v493 = vadd.f32 %v461, %v491
  %v494 = vadd.f32 %v462, %v491
  %v495 = vadd.f32 %v463, %v491
  %v496 = vadd.f32 %v464, %v491
  %v497 = vadd.f32 %v465, %v491
  %v498 = vadd.f32 %v466, %v491
  %v499 = vadd.f32 %v467, %v491
  %v500 = vadd.f32 %v468, %v491
  %501 = vset.pattern.permute.xlu0 5
  %502 = vperm.xlu0 %501, %v178
  %v503 = vpop.permute.xlu0 %502
  %v505 = vadd.f32 %v481, %v503
  %v506 = vadd.f32 %v482, %v503
  %v507 = vadd.f32 %v483, %v503
  %v508 = vadd.f32 %v484, %v503
  %v509 = vadd.f32 %v485, %v503
  %v510 = vadd.f32 %v486, %v503
  %v511 = vadd.f32 %v487, %v503
  %v512 = vadd.f32 %v488, %v503
  %v513 = vpack.c.bf16 %v493, %v493
  %v514 = vpack.c.bf16 %v505, %v505
  %v515 = vpack.c.bf16 %v494, %v494
  %v516 = vpack.c.bf16 %v506, %v506
  %v517 = vpack.c.bf16 %v495, %v495
  %v518 = vpack.c.bf16 %v507, %v507
  %v519 = vpack.c.bf16 %v496, %v496
  %v520 = vpack.c.bf16 %v508, %v508
  %v521 = vpack.c.bf16 %v497, %v497
  %v522 = vpack.c.bf16 %v509, %v509
  %v523 = vpack.c.bf16 %v498, %v498
  %v524 = vpack.c.bf16 %v510, %v510
  %v525 = vpack.c.bf16 %v499, %v499
  %v526 = vpack.c.bf16 %v511, %v511
  %v527 = vpack.c.bf16 %v500, %v500
  %v528 = vpack.c.bf16 %v512, %v512
  %v531 = vunpack.c.l.b16 %v513
  %v532 = vunpack.c.l.b16 %v514
  %v533 = vpack.c.b16 %v532, %v531
  %535 = vmatpush.bf16.xpose.msra.mxu0 0
  %536 = vmatpush.bf16.xpose.msra.mxu0 0
  %537 = vmatpush.bf16.xpose.msra.mxu0 0
  %538 = vmatpush.bf16.xpose.msra.mxu0 0
  %539 = vmatpush.bf16.xpose.msra.mxu0 0
  %540 = vmatpush.bf16.xpose.msra.mxu0 0
  %541 = vmatpush.bf16.xpose.msra.mxu0 0
  %542 = vmatpush.bf16.xpose.msra.mxu0 %v533
  %543 = vmatmul.bf16.gmra.mxu0 %v533
  %v544 = vpop.f32.mrf.mxu0
  %v545 = vadd.f32 0.0, %v544
  %v546 = vpop.f32.mrf.mxu0
  %v547 = vadd.f32 0.0, %v546
  %548 = vdwg.mxu0
  %v551 = vunpack.c.l.b16 %v515
  %v552 = vunpack.c.l.b16 %v516
  %v553 = vpack.c.b16 %v552, %v551
  %555 = vmatpush.bf16.xpose.msra.mxu0 0
  %556 = vmatpush.bf16.xpose.msra.mxu0 0
  %557 = vmatpush.bf16.xpose.msra.mxu0 0
  %558 = vmatpush.bf16.xpose.msra.mxu0 0
  %559 = vmatpush.bf16.xpose.msra.mxu0 0
  %560 = vmatpush.bf16.xpose.msra.mxu0 0
  %561 = vmatpush.bf16.xpose.msra.mxu0 0
  %562 = vmatpush.bf16.xpose.msra.mxu0 %v553
  %563 = vmatmul.bf16.gmra.mxu0 %v553
  %v564 = vpop.f32.mrf.mxu0
  %v565 = vadd.f32 0.0, %v564
  %v566 = vpop.f32.mrf.mxu0
  %v567 = vadd.f32 0.0, %v566
  %568 = vdwg.mxu0
  %v571 = vunpack.c.l.b16 %v517
  %v572 = vunpack.c.l.b16 %v518
  %v573 = vpack.c.b16 %v572, %v571
  %575 = vmatpush.bf16.xpose.msra.mxu0 0
  %576 = vmatpush.bf16.xpose.msra.mxu0 0
  %577 = vmatpush.bf16.xpose.msra.mxu0 0
  %578 = vmatpush.bf16.xpose.msra.mxu0 0
  %579 = vmatpush.bf16.xpose.msra.mxu0 0
  %580 = vmatpush.bf16.xpose.msra.mxu0 0
  %581 = vmatpush.bf16.xpose.msra.mxu0 0
  %582 = vmatpush.bf16.xpose.msra.mxu0 %v573
  %583 = vmatmul.bf16.gmra.mxu0 %v573
  %v584 = vpop.f32.mrf.mxu0
  %v585 = vadd.f32 0.0, %v584
  %v586 = vpop.f32.mrf.mxu0
  %v587 = vadd.f32 0.0, %v586
  %588 = vdwg.mxu0
  %v591 = vunpack.c.l.b16 %v519
  %v592 = vunpack.c.l.b16 %v520
  %v593 = vpack.c.b16 %v592, %v591
  %595 = vmatpush.bf16.xpose.msra.mxu0 0
  %596 = vmatpush.bf16.xpose.msra.mxu0 0
  %597 = vmatpush.bf16.xpose.msra.mxu0 0
  %598 = vmatpush.bf16.xpose.msra.mxu0 0
  %599 = vmatpush.bf16.xpose.msra.mxu0 0
  %600 = vmatpush.bf16.xpose.msra.mxu0 0
  %601 = vmatpush.bf16.xpose.msra.mxu0 0
  %602 = vmatpush.bf16.xpose.msra.mxu0 %v593
  %603 = vmatmul.bf16.gmra.mxu0 %v593
  %v604 = vpop.f32.mrf.mxu0
  %v605 = vadd.f32 0.0, %v604
  %v606 = vpop.f32.mrf.mxu0
  %v607 = vadd.f32 0.0, %v606
  %608 = vdwg.mxu0
  %v611 = vunpack.c.l.b16 %v521
  %v612 = vunpack.c.l.b16 %v522
  %v613 = vpack.c.b16 %v612, %v611
  %615 = vmatpush.bf16.xpose.msra.mxu0 0
  %616 = vmatpush.bf16.xpose.msra.mxu0 0
  %617 = vmatpush.bf16.xpose.msra.mxu0 0
  %618 = vmatpush.bf16.xpose.msra.mxu0 0
  %619 = vmatpush.bf16.xpose.msra.mxu0 0
  %620 = vmatpush.bf16.xpose.msra.mxu0 0
  %621 = vmatpush.bf16.xpose.msra.mxu0 0
  %622 = vmatpush.bf16.xpose.msra.mxu0 %v613
  %623 = vmatmul.bf16.gmra.mxu0 %v613
  %v624 = vpop.f32.mrf.mxu0
  %v625 = vadd.f32 0.0, %v624
  %v626 = vpop.f32.mrf.mxu0
  %v627 = vadd.f32 0.0, %v626
  %628 = vdwg.mxu0
  %v631 = vunpack.c.l.b16 %v523
  %v632 = vunpack.c.l.b16 %v524
  %v633 = vpack.c.b16 %v632, %v631
  %635 = vmatpush.bf16.xpose.msra.mxu0 0
  %636 = vmatpush.bf16.xpose.msra.mxu0 0
  %637 = vmatpush.bf16.xpose.msra.mxu0 0
  %638 = vmatpush.bf16.xpose.msra.mxu0 0
  %639 = vmatpush.bf16.xpose.msra.mxu0 0
  %640 = vmatpush.bf16.xpose.msra.mxu0 0
  %641 = vmatpush.bf16.xpose.msra.mxu0 0
  %642 = vmatpush.bf16.xpose.msra.mxu0 %v633
  %643 = vmatmul.bf16.gmra.mxu0 %v633
  %v644 = vpop.f32.mrf.mxu0
  %v645 = vadd.f32 0.0, %v644
  %v646 = vpop.f32.mrf.mxu0
  %v647 = vadd.f32 0.0, %v646
  %648 = vdwg.mxu0
  %v651 = vunpack.c.l.b16 %v525
  %v652 = vunpack.c.l.b16 %v526
  %v653 = vpack.c.b16 %v652, %v651
  %655 = vmatpush.bf16.xpose.msra.mxu0 0
  %656 = vmatpush.bf16.xpose.msra.mxu0 0
  %657 = vmatpush.bf16.xpose.msra.mxu0 0
  %658 = vmatpush.bf16.xpose.msra.mxu0 0
  %659 = vmatpush.bf16.xpose.msra.mxu0 0
  %660 = vmatpush.bf16.xpose.msra.mxu0 0
  %661 = vmatpush.bf16.xpose.msra.mxu0 0
  %662 = vmatpush.bf16.xpose.msra.mxu0 %v653
  %663 = vmatmul.bf16.gmra.mxu0 %v653
  %v664 = vpop.f32.mrf.mxu0
  %v665 = vadd.f32 0.0, %v664
  %v666 = vpop.f32.mrf.mxu0
  %v667 = vadd.f32 0.0, %v666
  %668 = vdwg.mxu0
  %v671 = vunpack.c.l.b16 %v527
  %v672 = vunpack.c.l.b16 %v528
  %v673 = vpack.c.b16 %v672, %v671
  %675 = vmatpush.bf16.xpose.msra.mxu0 0
  %676 = vmatpush.bf16.xpose.msra.mxu0 0
  %677 = vmatpush.bf16.xpose.msra.mxu0 0
  %678 = vmatpush.bf16.xpose.msra.mxu0 0
  %679 = vmatpush.bf16.xpose.msra.mxu0 0
  %680 = vmatpush.bf16.xpose.msra.mxu0 0
  %681 = vmatpush.bf16.xpose.msra.mxu0 0
  %682 = vmatpush.bf16.xpose.msra.mxu0 %v673
  %683 = vmatmul.bf16.gmra.mxu0 %v673
  %v684 = vpop.f32.mrf.mxu0
  %v685 = vadd.f32 0.0, %v684
  %v686 = vpop.f32.mrf.mxu0
  %v687 = vadd.f32 0.0, %v686
  %688 = vdwg.mxu0
  %v689 = vmul.f32 %v545, 0.007874016
  %v690 = vmul.f32 %v547, 0.007874016
  %v691 = vmul.f32 %v565, 0.007874016
  %v692 = vmul.f32 %v567, 0.007874016
  %v693 = vmul.f32 %v585, 0.007874016
  %v694 = vmul.f32 %v587, 0.007874016
  %v695 = vmul.f32 %v605, 0.007874016
  %v696 = vmul.f32 %v607, 0.007874016
  %v697 = vmul.f32 %v625, 0.007874016
  %v698 = vmul.f32 %v627, 0.007874016
  %v699 = vmul.f32 %v645, 0.007874016
  %v700 = vmul.f32 %v647, 0.007874016
  %v701 = vmul.f32 %v665, 0.007874016
  %v702 = vmul.f32 %v667, 0.007874016
  %v703 = vmul.f32 %v685, 0.007874016
  %v704 = vmul.f32 %v687, 0.007874016
  %707 = vrot.lane.b32.xlu0 %v691, 16
  %v708 = vpop.permute.xlu0 %707
  %709 = vrot.lane.b32.xlu0 %v692, 16
  %v710 = vpop.permute.xlu0 %709
  %715 = vrot.lane.b32.xlu0 %v693, 32
  %v716 = vpop.permute.xlu0 %715
  %717 = vrot.lane.b32.xlu0 %v694, 32
  %v718 = vpop.permute.xlu0 %717
  %723 = vrot.lane.b32.xlu0 %v695, 48
  %v724 = vpop.permute.xlu0 %723
  %725 = vrot.lane.b32.xlu0 %v696, 48
  %v726 = vpop.permute.xlu0 %725
  %731 = vrot.lane.b32.xlu0 %v697, 64
  %v732 = vpop.permute.xlu0 %731
  %733 = vrot.lane.b32.xlu0 %v698, 64
  %v734 = vpop.permute.xlu0 %733
  %739 = vrot.lane.b32.xlu0 %v699, 80
  %v740 = vpop.permute.xlu0 %739
  %741 = vrot.lane.b32.xlu0 %v700, 80
  %v742 = vpop.permute.xlu0 %741
  %747 = vrot.lane.b32.xlu0 %v701, 96
  %v748 = vpop.permute.xlu0 %747
  %749 = vrot.lane.b32.xlu0 %v702, 96
  %v750 = vpop.permute.xlu0 %749
  %755 = vrot.lane.b32.xlu0 %v703, 112
  %v756 = vpop.permute.xlu0 %755
  %757 = vrot.lane.b32.xlu0 %v704, 112
  %v758 = vpop.permute.xlu0 %757
  %vm761 = vcmask 130048
  %v762 = vsel %vm761, %v689, %v708
  %v763 = vsel %vm761, %v690, %v710
  %vm764 = vcmask 261120
  %v765 = vsel %vm764, %v762, %v716
  %v766 = vsel %vm764, %v763, %v718
  %vm767 = vcmask 392192
  %v768 = vsel %vm767, %v765, %v724
  %v769 = vsel %vm767, %v766, %v726
  %vm770 = vcmask 523264
  %v771 = vsel %vm770, %v768, %v732
  %v772 = vsel %vm770, %v769, %v734
  %vm773 = vcmask 654336
  %v774 = vsel %vm773, %v771, %v740
  %v775 = vsel %vm773, %v772, %v742
  %vm776 = vcmask 785408
  %v777 = vsel %vm776, %v774, %v748
  %v778 = vsel %vm776, %v775, %v750
  %vm779 = vcmask 916480
  %v780 = vsel %vm779, %v777, %v756
  %v781 = vsel %vm779, %v778, %v758
  %782 = vst [vmem:[%s4] sm:$0xff] %v780
  %783 = vst [vmem:[%s4 + $0x8] sm:$0xff] %v781
  // Predicated region
  $region18: #{_lambda_.1} parent=0 // pred_check
    _
  $region19: #{_lambda_.1} parent=0 // pred_check_branch
    %785 = sbr.rel (0) target = $region21
  $region20: #{_lambda_.1} parent=0 // pred_region
    _
  $region21: #{_lambda_.1} parent=0 // pred_fallthru
    _
  // Predicated region
  $region22: #{_lambda_.1} parent=0 // pred_check
    _
  $region23: #{_lambda_.1} parent=0 // pred_check_branch
    %787 = sbr.rel (0) target = $region25
  $region24: #{_lambda_.1} parent=0 // pred_region
    _
  $region25: #{_lambda_.1} parent=0 // pred_fallthru
    _

</llo_original>
